<compile_context>
chip_gen: v6e
topology: v6e:2x2x1
jax: 0.10.0
libtpu: 0.0.40
codegen_flags: <defaults>
</compile_context>

<pallas_src>
import functools

import jax
import jax.numpy as jnp
from jax.experimental import pallas as pl
from jax.experimental.pallas import tpu as pltpu


def _skelnet_fused_kernel(num_iter, H, W, chunk_rows, compute_dtype,
                          x_ref, mask_ref, w1t_ref, b1_ref, w2_ref, b2_ref,
                          out_ref, pa_ref, pb_ref, pt_ref):
    """Fused num_iter x (3x3 conv -> ReLU -> 1x1 conv) + sigmoid, one image.

    Flat "padded-row" layout: pixel (y, x) lives at flat index
    (y+1)*Wp + (x+1) with Wp = W + 2; the 1-pixel zero border of the padded
    buffer doubles as the conv zero padding on every iteration.

    x_ref:    (1, 1, (H+3)*Wp)  zero-padded, row-flattened input image
    mask_ref: (1, H*Wp)         1.0 at real pixels, 0.0 at padding columns
    w1t_ref:  (C, 9)            3x3 conv weights, tap index = 3*dy + dx
    b1_ref:   (C, 1)
    w2_ref:   (C, 1)            1x1 conv weights
    b2_ref:   (1, 1)
    out_ref:  (1, 1, H*Wp)      pre-slice output (wrapper drops pad columns)
    pa_ref, pb_ref: (1, (H+3)*Wp) VMEM ping-pong image buffers
    pt_ref:   (9, chunk_rows*Wp)  VMEM patch tile fed to the MXU
    """
    Wp = W + 2

    # Zero the ping-pong buffers: their never-overwritten border cells provide
    # the conv zero padding for every iteration.
    pa_ref[...] = jnp.zeros_like(pa_ref)
    pb_ref[...] = jnp.zeros_like(pb_ref)

    w1t = w1t_ref[...].astype(compute_dtype)     # (C, 9)   resident
    b1 = b1_ref[...]                             # (C, 1)   f32
    w2c = w2_ref[...]                            # (C, 1)   f32
    b2 = b2_ref[...]                             # (1, 1)   f32

    n_chunks = -(-H // chunk_rows)
    bufs = (pb_ref, pa_ref)

    for it in range(num_iter):
        last = it == num_iter - 1
        dst = bufs[it % 2]
        if it == 0:
            load = lambda a, b: x_ref[0, :, a:b]
        else:
            src = bufs[(it + 1) % 2]
            load = lambda a, b, src=src: src[:, a:b]

        for ci in range(n_chunks):
            r0 = ci * chunk_rows
            tr = min(chunk_rows, H - r0)
            base = r0 * Wp        # flat offset of first output position
            span = tr * Wp        # output positions (incl. 2 junk cols / row)

            # Assemble the (9, span) patch tile: tap (dy,dx) of output
            # position i is the source value at flat index base+dy*Wp+dx+i.
            for dy in range(3):
                for dx in range(3):
                    t = 3 * dy + dx
                    off = base + dy * Wp + dx
                    pt_ref[t:t + 1, :span] = load(off, off + span)

            # 3x3 conv as a (C,9)@(9,span) MXU matmul, lane-dense result.
            p = pt_ref[:, :span].astype(compute_dtype)
            h = jnp.dot(w1t, p, preferred_element_type=jnp.float32) + b1
            h = jnp.maximum(h, 0.0)                          # (C, span), f32
            # 1x1 conv as VPU multiply + sublane reduction (frees the MXU,
            # keeps the (1, span) result lane-dense).
            y = jnp.sum(h * w2c, axis=0, keepdims=True) + b2  # (1, span)

            if last:
                out_ref[0, :, base:base + span] = jax.nn.sigmoid(y)
            else:
                # Write back into padded layout (shift by Wp+1); the mask
                # zeroes the junk columns so they act as zero padding for the
                # next iteration.
                dst[:, Wp + 1 + base:Wp + 1 + base + span] = (
                    y * mask_ref[:, base:base + span])


def skeleton_net2d_forward(img, params, num_iter=3, val_mode=False,
                           compute_dtype=jnp.float32):
    """Forward pass of SkeletonNet2D.  img: (N, 1, H, W) NCHW float32.

    compute_dtype: dtype of the first matmul's MXU operands.  float32 matches
    the PyTorch module exactly; jnp.bfloat16 halves DMA bytes / doubles MXU
    throughput on v6e/v7x (accumulation stays float32 either way).
    """
    N, C, H, W = img.shape
    assert C == 1, "hypo_in_channels=1"
    assert num_iter >= 1
    w1t, b1, w2, b2 = params
    Ck = w1t.shape[0]
    Wp = W + 2
    Lbuf = (H + 3) * Wp      # 1 top pad row + H image rows + 2 bottom slack rows
    Lv = H * Wp              # flat output length before dropping pad columns

    # Host-side prep (cheap one-time XLA ops, NOT an im2col): zero-pad the
    # image and flatten its rows so all in-kernel tap reads are flat slices.
    xpad = jnp.pad(img[:, 0], ((0, 0), (1, 2), (1, 1))).reshape(N, 1, Lbuf)
    # 1.0 at real pixels, 0.0 at the 2 padding columns of each flat row.
    mask = (jnp.arange(Lv, dtype=jnp.int32) % Wp < W).astype(jnp.float32)
    mask = mask.reshape(1, Lv)

    # Row-chunking keeps the (C, chunk*Wp) hidden tile ~2 MiB regardless of
    # image size while keeping >=512 MXU columns per matmul.
    chunk_rows = max(1, min(H, 4096 // Wp))

    kernel = functools.partial(_skelnet_fused_kernel, num_iter, H, W,
                               chunk_rows, compute_dtype)

    out_flat = pl.pallas_call(
        kernel,
        out_shape=jax.ShapeDtypeStruct((N, 1, Lv), jnp.float32),
        grid_spec=pltpu.PrefetchScalarGridSpec(
            num_scalar_prefetch=0,
            grid=(N,),
            in_specs=[
                pl.BlockSpec((1, 1, Lbuf), lambda n: (n, 0, 0)),   # image
                pl.BlockSpec((1, Lv), lambda n: (0, 0)),           # mask (resident)
                pl.BlockSpec((Ck, 9), lambda n: (0, 0)),           # w1^T (resident)
                pl.BlockSpec((Ck, 1), lambda n: (0, 0)),           # b1
                pl.BlockSpec((Ck, 1), lambda n: (0, 0)),           # w2
                pl.BlockSpec((1, 1), lambda n: (0, 0)),            # b2
            ],
            out_specs=pl.BlockSpec((1, 1, Lv), lambda n: (n, 0, 0)),
            scratch_shapes=[
                pltpu.VMEM((1, Lbuf), jnp.float32),                # ping
                pltpu.VMEM((1, Lbuf), jnp.float32),                # pong
                pltpu.VMEM((9, chunk_rows * Wp), jnp.float32),     # patch tile
            ],
        ),
        compiler_params=pltpu.CompilerParams(
            dimension_semantics=("parallel",),
            vmem_limit_bytes=32 * 1024 * 1024,
        ),
    )(xpad, mask, w1t, b1, w2, b2)

    out = out_flat.reshape(N, H, Wp)[:, :, :W][:, None]   # drop pads -> NCHW
    if val_mode:
        # binarize_out: forward value of the straight-through estimator.
        # TODO(synk): the STE gradient trick is autograd-only; forward value preserved.
        out = (out > 0.5).astype(out.dtype)
    return out, None


def _reference_forward(img, params, num_iter=3):
    """Plain-JAX reference (same math, XLA ops) used for validation."""
    w1t, b1, w2, b2 = params
    x = img[:, 0]
    N, H, W = x.shape
    for _ in range(num_iter):
        xp = jnp.pad(x, ((0, 0), (1, 1), (1, 1)))
        taps = jnp.stack([xp[:, dy:dy + H, dx:dx + W]
                          for dy in range(3) for dx in range(3)], axis=-1)
        h = jnp.maximum(jnp.einsum('nhwt,ct->nhwc', taps, w1t) + b1[:, 0], 0.0)
        x = jnp.einsum('nhwc,c->nhw', h, w2[:, 0]) + b2[0, 0]
    return jax.nn.sigmoid(x)[:, None]


def init_params(key, skel_channels=128):
    """PyTorch-Conv2d-like uniform init (bound = 1/sqrt(fan_in))."""
    k1, k2, k3, k4 = jax.random.split(key, 4)
    bound1 = 1.0 / (1 * 3 * 3) ** 0.5
    # (C, 9): tap index = 3*dy + dx, matching the kernel's tap ordering.
    w1t = jax.random.uniform(k1, (skel_channels, 9), jnp.float32, -bound1, bound1)
    b1 = jax.random.uniform(k2, (skel_channels, 1), jnp.float32, -bound1, bound1)
    bound2 = 1.0 / skel_channels ** 0.5
    w2 = jax.random.uniform(k3, (skel_channels, 1), jnp.float32, -bound2, bound2)
    b2 = jax.random.uniform(k4, (1, 1), jnp.float32, -bound2, bound2)
    return w1t, b1, w2, b2


if __name__ == "__main__":
    key = jax.random.PRNGKey(0)
    pkey, xkey = jax.random.split(key)

    params = init_params(pkey, skel_channels=128)   # module default
    # Small input consistent with the module: batch=2, 1 channel, 16x16 (NCHW).
    img = jax.random.uniform(xkey, (2, 1, 16, 16), dtype=jnp.float32)

    fwd = jax.jit(functools.partial(skeleton_net2d_forward, num_iter=3,
                                    val_mode=False))
    out, aux = fwd(img, params)
    out = jax.block_until_ready(out)

    assert out.shape == (2, 1, 16, 16)
    assert aux is None
    assert bool(jnp.all(jnp.isfinite(out)))
    # Sigmoid output must lie in (0, 1).
    assert bool(jnp.all((out > 0.0) & (out < 1.0)))

    ref = _reference_forward(img, params, num_iter=3)
    max_err = float(jnp.max(jnp.abs(out - ref)))
    assert max_err < 5e-2, f"kernel/reference mismatch: {max_err}"

    print("KERNEL_OK")
</pallas_src>

<mosaic_0001>
module attributes {stable_mosaic.version = 11 : i64} {
  func.func @_skelnet_fused_kernel(%arg0: i32, %arg1: memref<1x1x342xf32, #tpu.memory_space<vmem>>, %arg2: memref<1x288xf32, #tpu.memory_space<vmem>>, %arg3: memref<128x9xf32, #tpu.memory_space<vmem>>, %arg4: memref<128x1xf32, #tpu.memory_space<vmem>>, %arg5: memref<128x1xf32, #tpu.memory_space<vmem>>, %arg6: memref<1x1xf32, #tpu.memory_space<vmem>>, %arg7: memref<1x1x288xf32, #tpu.memory_space<vmem>>, %arg8: memref<1x342xf32, #tpu.memory_space<vmem>>, %arg9: memref<1x342xf32, #tpu.memory_space<vmem>>, %arg10: memref<9x288xf32, #tpu.memory_space<vmem>>) attributes {dimension_semantics = [#tpu.dimension_semantics<parallel>], iteration_bounds = array<i64: 2>, scalar_prefetch = 0 : i64, scratch_operands = 3 : i64, tpu.core_type = #tpu.core_type<tc>, window_params = [{transform_indices = @transform_0, window_bounds = array<i64: 1, 1, 342>}, {pipeline_mode = #tpu.pipeline_mode<synchronous>, transform_indices = @transform_1, window_bounds = array<i64: 1, 288>}, {pipeline_mode = #tpu.pipeline_mode<synchronous>, transform_indices = @transform_2, window_bounds = array<i64: 128, 9>}, {pipeline_mode = #tpu.pipeline_mode<synchronous>, transform_indices = @transform_3, window_bounds = array<i64: 128, 1>}, {pipeline_mode = #tpu.pipeline_mode<synchronous>, transform_indices = @transform_4, window_bounds = array<i64: 128, 1>}, {pipeline_mode = #tpu.pipeline_mode<synchronous>, transform_indices = @transform_5, window_bounds = array<i64: 1, 1>}, {transform_indices = @transform_6, window_bounds = array<i64: 1, 1, 288>}]} {
    %cst = arith.constant 0.000000e+00 : f32
    %0 = vector.broadcast %cst : f32 to vector<1x342xf32>
    %c0 = arith.constant 0 : index
    %c0_0 = arith.constant 0 : index
    %1 = vector.load %arg8[%c0, %c0_0] : memref<1x342xf32, #tpu.memory_space<vmem>>, vector<1x342xf32>
    tpu.vector_store %arg8[%c0, %c0_0], %0 {strides = array<i32>} : memref<1x342xf32, #tpu.memory_space<vmem>>, vector<1x342xf32>,
    %cst_1 = arith.constant 0.000000e+00 : f32
    %2 = vector.broadcast %cst_1 : f32 to vector<1x342xf32>
    %c0_2 = arith.constant 0 : index
    %c0_3 = arith.constant 0 : index
    %3 = vector.load %arg9[%c0_2, %c0_3] : memref<1x342xf32, #tpu.memory_space<vmem>>, vector<1x342xf32>
    tpu.vector_store %arg9[%c0_2, %c0_3], %2 {strides = array<i32>} : memref<1x342xf32, #tpu.memory_space<vmem>>, vector<1x342xf32>,
    %c0_4 = arith.constant 0 : index
    %c0_5 = arith.constant 0 : index
    %4 = vector.load %arg3[%c0_4, %c0_5] : memref<128x9xf32, #tpu.memory_space<vmem>>, vector<128x9xf32>
    %c0_6 = arith.constant 0 : index
    %c0_7 = arith.constant 0 : index
    %5 = vector.load %arg4[%c0_6, %c0_7] : memref<128x1xf32, #tpu.memory_space<vmem>>, vector<128x1xf32>
    %c0_8 = arith.constant 0 : index
    %c0_9 = arith.constant 0 : index
    %6 = vector.load %arg5[%c0_8, %c0_9] : memref<128x1xf32, #tpu.memory_space<vmem>>, vector<128x1xf32>
    %c0_10 = arith.constant 0 : index
    %c0_11 = arith.constant 0 : index
    %7 = vector.load %arg6[%c0_10, %c0_11] : memref<1x1xf32, #tpu.memory_space<vmem>>, vector<1x1xf32>
    %c0_12 = arith.constant 0 : index
    %c0_13 = arith.constant 0 : index
    %c0_14 = arith.constant 0 : index
    %8 = vector.load %arg1[%c0_12, %c0_13, %c0_14] : memref<1x1x342xf32, #tpu.memory_space<vmem>>, vector<1x1x288xf32>
    %9 = vector.shape_cast %8 : vector<1x1x288xf32> to vector<1x288xf32>
    %c0_15 = arith.constant 0 : index
    %c0_16 = arith.constant 0 : index
    %10 = vector.load %arg10[%c0_15, %c0_16] : memref<9x288xf32, #tpu.memory_space<vmem>>, vector<1x288xf32>
    tpu.vector_store %arg10[%c0_15, %c0_16], %9 {strides = array<i32>} : memref<9x288xf32, #tpu.memory_space<vmem>>, vector<1x288xf32>,
    %c0_17 = arith.constant 0 : index
    %c0_18 = arith.constant 0 : index
    %c1 = arith.constant 1 : index
    %11 = vector.load %arg1[%c0_17, %c0_18, %c1] : memref<1x1x342xf32, #tpu.memory_space<vmem>>, vector<1x1x288xf32>
    %12 = vector.shape_cast %11 : vector<1x1x288xf32> to vector<1x288xf32>
    %c1_19 = arith.constant 1 : index
    %c0_20 = arith.constant 0 : index
    %13 = vector.load %arg10[%c1_19, %c0_20] : memref<9x288xf32, #tpu.memory_space<vmem>>, vector<1x288xf32>
    tpu.vector_store %arg10[%c1_19, %c0_20], %12 {strides = array<i32>} : memref<9x288xf32, #tpu.memory_space<vmem>>, vector<1x288xf32>,
    %c0_21 = arith.constant 0 : index
    %c0_22 = arith.constant 0 : index
    %c2 = arith.constant 2 : index
    %14 = vector.load %arg1[%c0_21, %c0_22, %c2] : memref<1x1x342xf32, #tpu.memory_space<vmem>>, vector<1x1x288xf32>
    %15 = vector.shape_cast %14 : vector<1x1x288xf32> to vector<1x288xf32>
    %c2_23 = arith.constant 2 : index
    %c0_24 = arith.constant 0 : index
    %16 = vector.load %arg10[%c2_23, %c0_24] : memref<9x288xf32, #tpu.memory_space<vmem>>, vector<1x288xf32>
    tpu.vector_store %arg10[%c2_23, %c0_24], %15 {strides = array<i32>} : memref<9x288xf32, #tpu.memory_space<vmem>>, vector<1x288xf32>,
    %c0_25 = arith.constant 0 : index
    %c0_26 = arith.constant 0 : index
    %c18 = arith.constant 18 : index
    %17 = vector.load %arg1[%c0_25, %c0_26, %c18] : memref<1x1x342xf32, #tpu.memory_space<vmem>>, vector<1x1x288xf32>
    %18 = vector.shape_cast %17 : vector<1x1x288xf32> to vector<1x288xf32>
    %c3 = arith.constant 3 : index
    %c0_27 = arith.constant 0 : index
    %19 = vector.load %arg10[%c3, %c0_27] : memref<9x288xf32, #tpu.memory_space<vmem>>, vector<1x288xf32>
    tpu.vector_store %arg10[%c3, %c0_27], %18 {strides = array<i32>} : memref<9x288xf32, #tpu.memory_space<vmem>>, vector<1x288xf32>,
    %c0_28 = arith.constant 0 : index
    %c0_29 = arith.constant 0 : index
    %c19 = arith.constant 19 : index
    %20 = vector.load %arg1[%c0_28, %c0_29, %c19] : memref<1x1x342xf32, #tpu.memory_space<vmem>>, vector<1x1x288xf32>
    %21 = vector.shape_cast %20 : vector<1x1x288xf32> to vector<1x288xf32>
    %c4 = arith.constant 4 : index
    %c0_30 = arith.constant 0 : index
    %22 = vector.load %arg10[%c4, %c0_30] : memref<9x288xf32, #tpu.memory_space<vmem>>, vector<1x288xf32>
    tpu.vector_store %arg10[%c4, %c0_30], %21 {strides = array<i32>} : memref<9x288xf32, #tpu.memory_space<vmem>>, vector<1x288xf32>,
    %c0_31 = arith.constant 0 : index
    %c0_32 = arith.constant 0 : index
    %c20 = arith.constant 20 : index
    %23 = vector.load %arg1[%c0_31, %c0_32, %c20] : memref<1x1x342xf32, #tpu.memory_space<vmem>>, vector<1x1x288xf32>
    %24 = vector.shape_cast %23 : vector<1x1x288xf32> to vector<1x288xf32>
    %c5 = arith.constant 5 : index
    %c0_33 = arith.constant 0 : index
    %25 = vector.load %arg10[%c5, %c0_33] : memref<9x288xf32, #tpu.memory_space<vmem>>, vector<1x288xf32>
    tpu.vector_store %arg10[%c5, %c0_33], %24 {strides = array<i32>} : memref<9x288xf32, #tpu.memory_space<vmem>>, vector<1x288xf32>,
    %c0_34 = arith.constant 0 : index
    %c0_35 = arith.constant 0 : index
    %c36 = arith.constant 36 : index
    %26 = vector.load %arg1[%c0_34, %c0_35, %c36] : memref<1x1x342xf32, #tpu.memory_space<vmem>>, vector<1x1x288xf32>
    %27 = vector.shape_cast %26 : vector<1x1x288xf32> to vector<1x288xf32>
    %c6 = arith.constant 6 : index
    %c0_36 = arith.constant 0 : index
    %28 = vector.load %arg10[%c6, %c0_36] : memref<9x288xf32, #tpu.memory_space<vmem>>, vector<1x288xf32>
    tpu.vector_store %arg10[%c6, %c0_36], %27 {strides = array<i32>} : memref<9x288xf32, #tpu.memory_space<vmem>>, vector<1x288xf32>,
    %c0_37 = arith.constant 0 : index
    %c0_38 = arith.constant 0 : index
    %c37 = arith.constant 37 : index
    %29 = vector.load %arg1[%c0_37, %c0_38, %c37] : memref<1x1x342xf32, #tpu.memory_space<vmem>>, vector<1x1x288xf32>
    %30 = vector.shape_cast %29 : vector<1x1x288xf32> to vector<1x288xf32>
    %c7 = arith.constant 7 : index
    %c0_39 = arith.constant 0 : index
    %31 = vector.load %arg10[%c7, %c0_39] : memref<9x288xf32, #tpu.memory_space<vmem>>, vector<1x288xf32>
    tpu.vector_store %arg10[%c7, %c0_39], %30 {strides = array<i32>} : memref<9x288xf32, #tpu.memory_space<vmem>>, vector<1x288xf32>,
    %c0_40 = arith.constant 0 : index
    %c0_41 = arith.constant 0 : index
    %c38 = arith.constant 38 : index
    %32 = vector.load %arg1[%c0_40, %c0_41, %c38] : memref<1x1x342xf32, #tpu.memory_space<vmem>>, vector<1x1x288xf32>
    %33 = vector.shape_cast %32 : vector<1x1x288xf32> to vector<1x288xf32>
    %c8 = arith.constant 8 : index
    %c0_42 = arith.constant 0 : index
    %34 = vector.load %arg10[%c8, %c0_42] : memref<9x288xf32, #tpu.memory_space<vmem>>, vector<1x288xf32>
    tpu.vector_store %arg10[%c8, %c0_42], %33 {strides = array<i32>} : memref<9x288xf32, #tpu.memory_space<vmem>>, vector<1x288xf32>,
    %c0_43 = arith.constant 0 : index
    %c0_44 = arith.constant 0 : index
    %35 = vector.load %arg10[%c0_43, %c0_44] : memref<9x288xf32, #tpu.memory_space<vmem>>, vector<9x288xf32>
    %cst_45 = arith.constant dense<0.000000e+00> : vector<128x288xf32>
    %36 = tpu.matmul %4, %35, %cst_45 {dimension_numbers = #tpu.dot_dimension_numbers<[1], [0], [0], [1], [0, 0, 1, 1], [], []>} : vector<128x9xf32>, vector<9x288xf32>, vector<128x288xf32> -> vector<128x288xf32>
    %37 = vector.broadcast %5 : vector<128x1xf32> to vector<128x288xf32>
    %38 = arith.addf %36, %37 : vector<128x288xf32>
    %cst_46 = arith.constant 0.000000e+00 : f32
    %39 = vector.broadcast %cst_46 : f32 to vector<128x288xf32>
    %40 = arith.maximumf %38, %39 : vector<128x288xf32>
    %41 = vector.broadcast %6 : vector<128x1xf32> to vector<128x288xf32>
    %42 = arith.mulf %40, %41 : vector<128x288xf32>
    %cst_47 = arith.constant dense<0.000000e+00> : vector<288xf32>
    %43 = vector.multi_reduction <add>, %42, %cst_47 [0] : vector<128x288xf32> to vector<288xf32>
    %44 = vector.shape_cast %43 : vector<288xf32> to vector<1x288xf32>
    %45 = vector.broadcast %7 : vector<1x1xf32> to vector<1x288xf32>
    %46 = arith.addf %44, %45 : vector<1x288xf32>
    %c0_48 = arith.constant 0 : index
    %c0_49 = arith.constant 0 : index
    %47 = vector.load %arg2[%c0_48, %c0_49] : memref<1x288xf32, #tpu.memory_space<vmem>>, vector<1x288xf32>
    %48 = arith.mulf %46, %47 : vector<1x288xf32>
    %c0_50 = arith.constant 0 : index
    %c19_51 = arith.constant 19 : index
    %49 = vector.load %arg9[%c0_50, %c19_51] : memref<1x342xf32, #tpu.memory_space<vmem>>, vector<1x288xf32>
    tpu.vector_store %arg9[%c0_50, %c19_51], %48 {strides = array<i32>} : memref<1x342xf32, #tpu.memory_space<vmem>>, vector<1x288xf32>,
    %c0_52 = arith.constant 0 : index
    %c0_53 = arith.constant 0 : index
    %50 = vector.load %arg9[%c0_52, %c0_53] : memref<1x342xf32, #tpu.memory_space<vmem>>, vector<1x288xf32>
    %c0_54 = arith.constant 0 : index
    %c0_55 = arith.constant 0 : index
    %51 = vector.load %arg10[%c0_54, %c0_55] : memref<9x288xf32, #tpu.memory_space<vmem>>, vector<1x288xf32>
    tpu.vector_store %arg10[%c0_54, %c0_55], %50 {strides = array<i32>} : memref<9x288xf32, #tpu.memory_space<vmem>>, vector<1x288xf32>,
    %c0_56 = arith.constant 0 : index
    %c1_57 = arith.constant 1 : index
    %52 = vector.load %arg9[%c0_56, %c1_57] : memref<1x342xf32, #tpu.memory_space<vmem>>, vector<1x288xf32>
    %c1_58 = arith.constant 1 : index
    %c0_59 = arith.constant 0 : index
    %53 = vector.load %arg10[%c1_58, %c0_59] : memref<9x288xf32, #tpu.memory_space<vmem>>, vector<1x288xf32>
    tpu.vector_store %arg10[%c1_58, %c0_59], %52 {strides = array<i32>} : memref<9x288xf32, #tpu.memory_space<vmem>>, vector<1x288xf32>,
    %c0_60 = arith.constant 0 : index
    %c2_61 = arith.constant 2 : index
    %54 = vector.load %arg9[%c0_60, %c2_61] : memref<1x342xf32, #tpu.memory_space<vmem>>, vector<1x288xf32>
    %c2_62 = arith.constant 2 : index
    %c0_63 = arith.constant 0 : index
    %55 = vector.load %arg10[%c2_62, %c0_63] : memref<9x288xf32, #tpu.memory_space<vmem>>, vector<1x288xf32>
    tpu.vector_store %arg10[%c2_62, %c0_63], %54 {strides = array<i32>} : memref<9x288xf32, #tpu.memory_space<vmem>>, vector<1x288xf32>,
    %c0_64 = arith.constant 0 : index
    %c18_65 = arith.constant 18 : index
    %56 = vector.load %arg9[%c0_64, %c18_65] : memref<1x342xf32, #tpu.memory_space<vmem>>, vector<1x288xf32>
    %c3_66 = arith.constant 3 : index
    %c0_67 = arith.constant 0 : index
    %57 = vector.load %arg10[%c3_66, %c0_67] : memref<9x288xf32, #tpu.memory_space<vmem>>, vector<1x288xf32>
    tpu.vector_store %arg10[%c3_66, %c0_67], %56 {strides = array<i32>} : memref<9x288xf32, #tpu.memory_space<vmem>>, vector<1x288xf32>,
    %c0_68 = arith.constant 0 : index
    %c19_69 = arith.constant 19 : index
    %58 = vector.load %arg9[%c0_68, %c19_69] : memref<1x342xf32, #tpu.memory_space<vmem>>, vector<1x288xf32>
    %c4_70 = arith.constant 4 : index
    %c0_71 = arith.constant 0 : index
    %59 = vector.load %arg10[%c4_70, %c0_71] : memref<9x288xf32, #tpu.memory_space<vmem>>, vector<1x288xf32>
    tpu.vector_store %arg10[%c4_70, %c0_71], %58 {strides = array<i32>} : memref<9x288xf32, #tpu.memory_space<vmem>>, vector<1x288xf32>,
    %c0_72 = arith.constant 0 : index
    %c20_73 = arith.constant 20 : index
    %60 = vector.load %arg9[%c0_72, %c20_73] : memref<1x342xf32, #tpu.memory_space<vmem>>, vector<1x288xf32>
    %c5_74 = arith.constant 5 : index
    %c0_75 = arith.constant 0 : index
    %61 = vector.load %arg10[%c5_74, %c0_75] : memref<9x288xf32, #tpu.memory_space<vmem>>, vector<1x288xf32>
    tpu.vector_store %arg10[%c5_74, %c0_75], %60 {strides = array<i32>} : memref<9x288xf32, #tpu.memory_space<vmem>>, vector<1x288xf32>,
    %c0_76 = arith.constant 0 : index
    %c36_77 = arith.constant 36 : index
    %62 = vector.load %arg9[%c0_76, %c36_77] : memref<1x342xf32, #tpu.memory_space<vmem>>, vector<1x288xf32>
    %c6_78 = arith.constant 6 : index
    %c0_79 = arith.constant 0 : index
    %63 = vector.load %arg10[%c6_78, %c0_79] : memref<9x288xf32, #tpu.memory_space<vmem>>, vector<1x288xf32>
    tpu.vector_store %arg10[%c6_78, %c0_79], %62 {strides = array<i32>} : memref<9x288xf32, #tpu.memory_space<vmem>>, vector<1x288xf32>,
    %c0_80 = arith.constant 0 : index
    %c37_81 = arith.constant 37 : index
    %64 = vector.load %arg9[%c0_80, %c37_81] : memref<1x342xf32, #tpu.memory_space<vmem>>, vector<1x288xf32>
    %c7_82 = arith.constant 7 : index
    %c0_83 = arith.constant 0 : index
    %65 = vector.load %arg10[%c7_82, %c0_83] : memref<9x288xf32, #tpu.memory_space<vmem>>, vector<1x288xf32>
    tpu.vector_store %arg10[%c7_82, %c0_83], %64 {strides = array<i32>} : memref<9x288xf32, #tpu.memory_space<vmem>>, vector<1x288xf32>,
    %c0_84 = arith.constant 0 : index
    %c38_85 = arith.constant 38 : index
    %66 = vector.load %arg9[%c0_84, %c38_85] : memref<1x342xf32, #tpu.memory_space<vmem>>, vector<1x288xf32>
    %c8_86 = arith.constant 8 : index
    %c0_87 = arith.constant 0 : index
    %67 = vector.load %arg10[%c8_86, %c0_87] : memref<9x288xf32, #tpu.memory_space<vmem>>, vector<1x288xf32>
    tpu.vector_store %arg10[%c8_86, %c0_87], %66 {strides = array<i32>} : memref<9x288xf32, #tpu.memory_space<vmem>>, vector<1x288xf32>,
    %c0_88 = arith.constant 0 : index
    %c0_89 = arith.constant 0 : index
    %68 = vector.load %arg10[%c0_88, %c0_89] : memref<9x288xf32, #tpu.memory_space<vmem>>, vector<9x288xf32>
    %cst_90 = arith.constant dense<0.000000e+00> : vector<128x288xf32>
    %69 = tpu.matmul %4, %68, %cst_90 {dimension_numbers = #tpu.dot_dimension_numbers<[1], [0], [0], [1], [0, 0, 1, 1], [], []>} : vector<128x9xf32>, vector<9x288xf32>, vector<128x288xf32> -> vector<128x288xf32>
    %70 = vector.broadcast %5 : vector<128x1xf32> to vector<128x288xf32>
    %71 = arith.addf %69, %70 : vector<128x288xf32>
    %cst_91 = arith.constant 0.000000e+00 : f32
    %72 = vector.broadcast %cst_91 : f32 to vector<128x288xf32>
    %73 = arith.maximumf %71, %72 : vector<128x288xf32>
    %74 = vector.broadcast %6 : vector<128x1xf32> to vector<128x288xf32>
    %75 = arith.mulf %73, %74 : vector<128x288xf32>
    %cst_92 = arith.constant dense<0.000000e+00> : vector<288xf32>
    %76 = vector.multi_reduction <add>, %75, %cst_92 [0] : vector<128x288xf32> to vector<288xf32>
    %77 = vector.shape_cast %76 : vector<288xf32> to vector<1x288xf32>
    %78 = vector.broadcast %7 : vector<1x1xf32> to vector<1x288xf32>
    %79 = arith.addf %77, %78 : vector<1x288xf32>
    %c0_93 = arith.constant 0 : index
    %c0_94 = arith.constant 0 : index
    %80 = vector.load %arg2[%c0_93, %c0_94] : memref<1x288xf32, #tpu.memory_space<vmem>>, vector<1x288xf32>
    %81 = arith.mulf %79, %80 : vector<1x288xf32>
    %c0_95 = arith.constant 0 : index
    %c19_96 = arith.constant 19 : index
    %82 = vector.load %arg8[%c0_95, %c19_96] : memref<1x342xf32, #tpu.memory_space<vmem>>, vector<1x288xf32>
    tpu.vector_store %arg8[%c0_95, %c19_96], %81 {strides = array<i32>} : memref<1x342xf32, #tpu.memory_space<vmem>>, vector<1x288xf32>,
    %c0_97 = arith.constant 0 : index
    %c0_98 = arith.constant 0 : index
    %83 = vector.load %arg8[%c0_97, %c0_98] : memref<1x342xf32, #tpu.memory_space<vmem>>, vector<1x288xf32>
    %c0_99 = arith.constant 0 : index
    %c0_100 = arith.constant 0 : index
    %84 = vector.load %arg10[%c0_99, %c0_100] : memref<9x288xf32, #tpu.memory_space<vmem>>, vector<1x288xf32>
    tpu.vector_store %arg10[%c0_99, %c0_100], %83 {strides = array<i32>} : memref<9x288xf32, #tpu.memory_space<vmem>>, vector<1x288xf32>,
    %c0_101 = arith.constant 0 : index
    %c1_102 = arith.constant 1 : index
    %85 = vector.load %arg8[%c0_101, %c1_102] : memref<1x342xf32, #tpu.memory_space<vmem>>, vector<1x288xf32>
    %c1_103 = arith.constant 1 : index
    %c0_104 = arith.constant 0 : index
    %86 = vector.load %arg10[%c1_103, %c0_104] : memref<9x288xf32, #tpu.memory_space<vmem>>, vector<1x288xf32>
    tpu.vector_store %arg10[%c1_103, %c0_104], %85 {strides = array<i32>} : memref<9x288xf32, #tpu.memory_space<vmem>>, vector<1x288xf32>,
    %c0_105 = arith.constant 0 : index
    %c2_106 = arith.constant 2 : index
    %87 = vector.load %arg8[%c0_105, %c2_106] : memref<1x342xf32, #tpu.memory_space<vmem>>, vector<1x288xf32>
    %c2_107 = arith.constant 2 : index
    %c0_108 = arith.constant 0 : index
    %88 = vector.load %arg10[%c2_107, %c0_108] : memref<9x288xf32, #tpu.memory_space<vmem>>, vector<1x288xf32>
    tpu.vector_store %arg10[%c2_107, %c0_108], %87 {strides = array<i32>} : memref<9x288xf32, #tpu.memory_space<vmem>>, vector<1x288xf32>,
    %c0_109 = arith.constant 0 : index
    %c18_110 = arith.constant 18 : index
    %89 = vector.load %arg8[%c0_109, %c18_110] : memref<1x342xf32, #tpu.memory_space<vmem>>, vector<1x288xf32>
    %c3_111 = arith.constant 3 : index
    %c0_112 = arith.constant 0 : index
    %90 = vector.load %arg10[%c3_111, %c0_112] : memref<9x288xf32, #tpu.memory_space<vmem>>, vector<1x288xf32>
    tpu.vector_store %arg10[%c3_111, %c0_112], %89 {strides = array<i32>} : memref<9x288xf32, #tpu.memory_space<vmem>>, vector<1x288xf32>,
    %c0_113 = arith.constant 0 : index
    %c19_114 = arith.constant 19 : index
    %91 = vector.load %arg8[%c0_113, %c19_114] : memref<1x342xf32, #tpu.memory_space<vmem>>, vector<1x288xf32>
    %c4_115 = arith.constant 4 : index
    %c0_116 = arith.constant 0 : index
    %92 = vector.load %arg10[%c4_115, %c0_116] : memref<9x288xf32, #tpu.memory_space<vmem>>, vector<1x288xf32>
    tpu.vector_store %arg10[%c4_115, %c0_116], %91 {strides = array<i32>} : memref<9x288xf32, #tpu.memory_space<vmem>>, vector<1x288xf32>,
    %c0_117 = arith.constant 0 : index
    %c20_118 = arith.constant 20 : index
    %93 = vector.load %arg8[%c0_117, %c20_118] : memref<1x342xf32, #tpu.memory_space<vmem>>, vector<1x288xf32>
    %c5_119 = arith.constant 5 : index
    %c0_120 = arith.constant 0 : index
    %94 = vector.load %arg10[%c5_119, %c0_120] : memref<9x288xf32, #tpu.memory_space<vmem>>, vector<1x288xf32>
    tpu.vector_store %arg10[%c5_119, %c0_120], %93 {strides = array<i32>} : memref<9x288xf32, #tpu.memory_space<vmem>>, vector<1x288xf32>,
    %c0_121 = arith.constant 0 : index
    %c36_122 = arith.constant 36 : index
    %95 = vector.load %arg8[%c0_121, %c36_122] : memref<1x342xf32, #tpu.memory_space<vmem>>, vector<1x288xf32>
    %c6_123 = arith.constant 6 : index
    %c0_124 = arith.constant 0 : index
    %96 = vector.load %arg10[%c6_123, %c0_124] : memref<9x288xf32, #tpu.memory_space<vmem>>, vector<1x288xf32>
    tpu.vector_store %arg10[%c6_123, %c0_124], %95 {strides = array<i32>} : memref<9x288xf32, #tpu.memory_space<vmem>>, vector<1x288xf32>,
    %c0_125 = arith.constant 0 : index
    %c37_126 = arith.constant 37 : index
    %97 = vector.load %arg8[%c0_125, %c37_126] : memref<1x342xf32, #tpu.memory_space<vmem>>, vector<1x288xf32>
    %c7_127 = arith.constant 7 : index
    %c0_128 = arith.constant 0 : index
    %98 = vector.load %arg10[%c7_127, %c0_128] : memref<9x288xf32, #tpu.memory_space<vmem>>, vector<1x288xf32>
    tpu.vector_store %arg10[%c7_127, %c0_128], %97 {strides = array<i32>} : memref<9x288xf32, #tpu.memory_space<vmem>>, vector<1x288xf32>,
    %c0_129 = arith.constant 0 : index
    %c38_130 = arith.constant 38 : index
    %99 = vector.load %arg8[%c0_129, %c38_130] : memref<1x342xf32, #tpu.memory_space<vmem>>, vector<1x288xf32>
    %c8_131 = arith.constant 8 : index
    %c0_132 = arith.constant 0 : index
    %100 = vector.load %arg10[%c8_131, %c0_132] : memref<9x288xf32, #tpu.memory_space<vmem>>, vector<1x288xf32>
    tpu.vector_store %arg10[%c8_131, %c0_132], %99 {strides = array<i32>} : memref<9x288xf32, #tpu.memory_space<vmem>>, vector<1x288xf32>,
    %c0_133 = arith.constant 0 : index
    %c0_134 = arith.constant 0 : index
    %101 = vector.load %arg10[%c0_133, %c0_134] : memref<9x288xf32, #tpu.memory_space<vmem>>, vector<9x288xf32>
    %cst_135 = arith.constant dense<0.000000e+00> : vector<128x288xf32>
    %102 = tpu.matmul %4, %101, %cst_135 {dimension_numbers = #tpu.dot_dimension_numbers<[1], [0], [0], [1], [0, 0, 1, 1], [], []>} : vector<128x9xf32>, vector<9x288xf32>, vector<128x288xf32> -> vector<128x288xf32>
    %103 = vector.broadcast %5 : vector<128x1xf32> to vector<128x288xf32>
    %104 = arith.addf %102, %103 : vector<128x288xf32>
    %cst_136 = arith.constant 0.000000e+00 : f32
    %105 = vector.broadcast %cst_136 : f32 to vector<128x288xf32>
    %106 = arith.maximumf %104, %105 : vector<128x288xf32>
    %107 = vector.broadcast %6 : vector<128x1xf32> to vector<128x288xf32>
    %108 = arith.mulf %106, %107 : vector<128x288xf32>
    %cst_137 = arith.constant dense<0.000000e+00> : vector<288xf32>
    %109 = vector.multi_reduction <add>, %108, %cst_137 [0] : vector<128x288xf32> to vector<288xf32>
    %110 = vector.shape_cast %109 : vector<288xf32> to vector<1x288xf32>
    %111 = vector.broadcast %7 : vector<1x1xf32> to vector<1x288xf32>
    %112 = arith.addf %110, %111 : vector<1x288xf32>
    %113 = arith.negf %112 : vector<1x288xf32>
    %114 = math.exp %113 : vector<1x288xf32>
    %cst_138 = arith.constant 1.000000e+00 : f32
    %115 = vector.broadcast %cst_138 : f32 to vector<1x288xf32>
    %116 = arith.addf %115, %114 : vector<1x288xf32>
    %117 = arith.divf %115, %116 : vector<1x288xf32>
    %c0_139 = arith.constant 0 : index
    %c0_140 = arith.constant 0 : index
    %c0_141 = arith.constant 0 : index
    %118 = vector.load %arg7[%c0_139, %c0_140, %c0_141] : memref<1x1x288xf32, #tpu.memory_space<vmem>>, vector<1x1x288xf32>
    %119 = vector.shape_cast %118 : vector<1x1x288xf32> to vector<1x288xf32>
    %120 = vector.shape_cast %117 : vector<1x288xf32> to vector<1x1x288xf32>
    tpu.vector_store %arg7[%c0_139, %c0_140, %c0_141], %120 {strides = array<i32>} : memref<1x1x288xf32, #tpu.memory_space<vmem>>, vector<1x1x288xf32>,
    return
  }
  func.func @transform_0(%arg0: i32) -> (i32, i32, i32) {
    %c0_i32 = arith.constant 0 : i32
    %c0_i32_0 = arith.constant 0 : i32
    %c0_i32_1 = arith.constant 0 : i32
    return %arg0, %c0_i32, %c0_i32_0 : i32, i32, i32
  }
  func.func @transform_1(%arg0: i32) -> (i32, i32) {
    %c0_i32 = arith.constant 0 : i32
    %c0_i32_0 = arith.constant 0 : i32
    %c0_i32_1 = arith.constant 0 : i32
    return %c0_i32, %c0_i32_0 : i32, i32
  }
  func.func @transform_2(%arg0: i32) -> (i32, i32) {
    %c0_i32 = arith.constant 0 : i32
    %c0_i32_0 = arith.constant 0 : i32
    %c0_i32_1 = arith.constant 0 : i32
    return %c0_i32, %c0_i32_0 : i32, i32
  }
  func.func @transform_3(%arg0: i32) -> (i32, i32) {
    %c0_i32 = arith.constant 0 : i32
    %c0_i32_0 = arith.constant 0 : i32
    %c0_i32_1 = arith.constant 0 : i32
    return %c0_i32, %c0_i32_0 : i32, i32
  }
  func.func @transform_4(%arg0: i32) -> (i32, i32) {
    %c0_i32 = arith.constant 0 : i32
    %c0_i32_0 = arith.constant 0 : i32
    %c0_i32_1 = arith.constant 0 : i32
    return %c0_i32, %c0_i32_0 : i32, i32
  }
  func.func @transform_5(%arg0: i32) -> (i32, i32) {
    %c0_i32 = arith.constant 0 : i32
    %c0_i32_0 = arith.constant 0 : i32
    %c0_i32_1 = arith.constant 0 : i32
    return %c0_i32, %c0_i32_0 : i32, i32
  }
  func.func @transform_6(%arg0: i32) -> (i32, i32, i32) {
    %c0_i32 = arith.constant 0 : i32
    %c0_i32_0 = arith.constant 0 : i32
    %c0_i32_1 = arith.constant 0 : i32
    return %arg0, %c0_i32, %c0_i32_0 : i32, i32, i32
  }
}

</mosaic_0001>

<llo_original>
// kernel: skeleton_net2d_forward.1
$region0: #{skeleton_net2d_forward.1}
  #allocation0 [shape = 'u32[]', space=smem, size = 0x4, offset = 0x4, fixed_abs, tag = 'smem constant byte address 0x4 - core index']
  #allocation1 [shape = 'u32[144,128]{1,0:T(1,128)}', space=vmem, size = 0x12000, scoped, tag = 'internal scratch']
  #allocation2 [shape = 'f32[1,342]{1,0:T(1,128)}', space=vmem, size = 0x600, scoped, tag = 'scratch operand']
  #allocation3 [shape = 'f32[1,342]{1,0:T(1,128)}', space=vmem, size = 0x600, scoped, tag = 'scratch operand']
  #allocation4 [shape = 'f32[9,288]{1,0:T(8,128)}', space=vmem, size = 0x6000, scoped, tag = 'scratch operand']
  #allocation5 [shape = 'f32[1,1]{1,0:T(1,128)S(1)}', space=vmem, size = 0x200, scoped, tag = 'scoped memory for skeleton_net2d_forward.1']
  %s0 = inlined_call_operand.vmem [shape: f32[2,1,342], index: 0, kind: input, shape index: {}]
  %s1 = inlined_call_operand.vmem [shape: f32[1,288], index: 1, kind: input, shape index: {}]
  %s2 = inlined_call_operand.vmem [shape: f32[128,9], index: 2, kind: input, shape index: {}]
  %s3 = inlined_call_operand.vmem [shape: f32[128,1], index: 3, kind: input, shape index: {}]
  %s4 = inlined_call_operand.vmem [shape: f32[128,1], index: 4, kind: input, shape index: {}]
  %s5 = inlined_call_operand.<no memory space> [shape: f32[1,1], index: 5, kind: input, shape index: {}]
  %s6 = inlined_call_operand.vmem [shape: f32[2,1,288], index: 6, kind: output, shape index: {}]
  %s7 = sld [smem:[#allocation0]]
  $region57: #{skeleton_net2d_forward.1} parent=0
    _
  %s9 = ssub.s32 1, %s7
  %s10 = scalar_select 0, %s9, %s7
  %v11 = vstv %s5
  %12 = vst [vmem:[#allocation5] sm:$0x1] %v11
  loop: start=0, step=1, limit=4
  $region2: #{skeleton_net2d_forward.1} parent=0 // loop_pre_header
    _
  $region3: #{skeleton_net2d_forward.1} parent=0 // loop_header
    %s14 = sphi 0, %s18
    %p15 = scmp.ge.s32.totalorder %s14, 4
    %s24 = sphi 0, %s26
    %s27 = sphi 0, %s24
    %s28 = sphi 0, %s27
    %s44 = sphi 0, %s28
    %s48 = sphi 0, %s48
    %s50 = sphi 0, %s48
    %s51 = sphi 0, %s50
    %s65 = sphi 0, %s51
    %s69 = sphi 0, %s69
    %s71 = sphi 0, %s69
    %s72 = sphi 0, %s71
    %s86 = sphi 0, %s72
    %s90 = sphi 0, %s90
    %s92 = sphi 0, %s90
    %s93 = sphi 0, %s92
    %s107 = sphi 0, %s93
    %s111 = sphi 0, %s111
    %s113 = sphi 0, %s111
    %s114 = sphi 0, %s113
    %s128 = sphi 0, %s114
    %s132 = sphi 0, %s132
    %s134 = sphi 0, %s132
    %s135 = sphi 0, %s134
    %s149 = sphi 0, %s135
    %s155 = sphi 0, %s157
    %s158 = sphi 0, %s155
    %s159 = sphi 0, %s158
    %s175 = sphi 0, %s159
  $region4: #{skeleton_net2d_forward.1} parent=0 // loop_header_branch
    %17 = sbr.rel (%p15) target = $region8
  $region5: #{skeleton_net2d_forward.1} parent=0 // loop_body
    %s19 = ssub.s32 %s14, 1
    %s20 = ssub.s32 %s14, 2
    %s21 = sadd.s32 %s14, 1
    %s22 = ssub.s32 %s14, %s21
    %p23 = scmp.eq.s32.totalorder %s22, 0
    %s25 = sadd.s32 %s24, 1
    %s26 = scalar_select %p23, %s24, %s25
    %p29 = pneg %p23
    %p30 = scmp.eq.s32.totalorder %s14, 1
    %p31 = por %p29, %p30
    %p32 = scmp.ne.s32.totalorder %s24, %s27
    %p33 = scmp.eq.s32.totalorder %s14, 0
    %p34 = por %p32, %p33
    %p35 = scmp.ne.s32.totalorder %s24, %s27
    %p36 = scmp.eq.s32.totalorder %s19, 1
    %p37 = por %p35, %p36
    %p38 = scmp.ne.s32.totalorder %s27, %s28
    %p39 = scmp.eq.s32.totalorder %s19, 0
    %p40 = por %p38, %p39
    %p41 = scmp.ne.s32.totalorder %s27, %s28
    %p42 = scmp.eq.s32.totalorder %s20, 1
    %p43 = por %p41, %p42
    %p45 = scmp.ne.s32.totalorder %s28, %s44
    %p46 = scmp.eq.s32.totalorder %s20, 0
    %p47 = por %p45, %p46
    %s49 = sadd.s32 %s48, 1
    %p52 = scmp.eq.s32.totalorder %s14, 1
    %p53 = scmp.ne.s32.totalorder %s48, %s50
    %p54 = scmp.eq.s32.totalorder %s14, 0
    %p55 = por %p53, %p54
    %p56 = scmp.ne.s32.totalorder %s48, %s50
    %p57 = scmp.eq.s32.totalorder %s19, 1
    %p58 = por %p56, %p57
    %p59 = scmp.ne.s32.totalorder %s50, %s51
    %p60 = scmp.eq.s32.totalorder %s19, 0
    %p61 = por %p59, %p60
    %p62 = scmp.ne.s32.totalorder %s50, %s51
    %p63 = scmp.eq.s32.totalorder %s20, 1
    %p64 = por %p62, %p63
    %p66 = scmp.ne.s32.totalorder %s51, %s65
    %p67 = scmp.eq.s32.totalorder %s20, 0
    %p68 = por %p66, %p67
    %s70 = sadd.s32 %s69, 1
    %p73 = scmp.eq.s32.totalorder %s14, 1
    %p74 = scmp.ne.s32.totalorder %s69, %s71
    %p75 = scmp.eq.s32.totalorder %s14, 0
    %p76 = por %p74, %p75
    %p77 = scmp.ne.s32.totalorder %s69, %s71
    %p78 = scmp.eq.s32.totalorder %s19, 1
    %p79 = por %p77, %p78
    %p80 = scmp.ne.s32.totalorder %s71, %s72
    %p81 = scmp.eq.s32.totalorder %s19, 0
    %p82 = por %p80, %p81
    %p83 = scmp.ne.s32.totalorder %s71, %s72
    %p84 = scmp.eq.s32.totalorder %s20, 1
    %p85 = por %p83, %p84
    %p87 = scmp.ne.s32.totalorder %s72, %s86
    %p88 = scmp.eq.s32.totalorder %s20, 0
    %p89 = por %p87, %p88
    %s91 = sadd.s32 %s90, 1
    %p94 = scmp.eq.s32.totalorder %s14, 1
    %p95 = scmp.ne.s32.totalorder %s90, %s92
    %p96 = scmp.eq.s32.totalorder %s14, 0
    %p97 = por %p95, %p96
    %p98 = scmp.ne.s32.totalorder %s90, %s92
    %p99 = scmp.eq.s32.totalorder %s19, 1
    %p100 = por %p98, %p99
    %p101 = scmp.ne.s32.totalorder %s92, %s93
    %p102 = scmp.eq.s32.totalorder %s19, 0
    %p103 = por %p101, %p102
    %p104 = scmp.ne.s32.totalorder %s92, %s93
    %p105 = scmp.eq.s32.totalorder %s20, 1
    %p106 = por %p104, %p105
    %p108 = scmp.ne.s32.totalorder %s93, %s107
    %p109 = scmp.eq.s32.totalorder %s20, 0
    %p110 = por %p108, %p109
    %s112 = sadd.s32 %s111, 1
    %p115 = scmp.eq.s32.totalorder %s14, 1
    %p116 = scmp.ne.s32.totalorder %s111, %s113
    %p117 = scmp.eq.s32.totalorder %s14, 0
    %p118 = por %p116, %p117
    %p119 = scmp.ne.s32.totalorder %s111, %s113
    %p120 = scmp.eq.s32.totalorder %s19, 1
    %p121 = por %p119, %p120
    %p122 = scmp.ne.s32.totalorder %s113, %s114
    %p123 = scmp.eq.s32.totalorder %s19, 0
    %p124 = por %p122, %p123
    %p125 = scmp.ne.s32.totalorder %s113, %s114
    %p126 = scmp.eq.s32.totalorder %s20, 1
    %p127 = por %p125, %p126
    %p129 = scmp.ne.s32.totalorder %s114, %s128
    %p130 = scmp.eq.s32.totalorder %s20, 0
    %p131 = por %p129, %p130
    %s133 = sadd.s32 %s132, 1
    %p136 = scmp.eq.s32.totalorder %s14, 1
    %p137 = scmp.ne.s32.totalorder %s132, %s134
    %p138 = scmp.eq.s32.totalorder %s14, 0
    %p139 = por %p137, %p138
    %p140 = scmp.ne.s32.totalorder %s132, %s134
    %p141 = scmp.eq.s32.totalorder %s19, 1
    %p142 = por %p140, %p141
    %p143 = scmp.ne.s32.totalorder %s134, %s135
    %p144 = scmp.eq.s32.totalorder %s19, 0
    %p145 = por %p143, %p144
    %p146 = scmp.ne.s32.totalorder %s134, %s135
    %p147 = scmp.eq.s32.totalorder %s20, 1
    %p148 = por %p146, %p147
    %p150 = scmp.ne.s32.totalorder %s135, %s149
    %p151 = scmp.eq.s32.totalorder %s20, 0
    %p152 = por %p150, %p151
    %s153 = ssub.s32 %s14, %s21
    %p154 = scmp.eq.s32.totalorder %s153, 0
    %s156 = sadd.s32 %s155, 1
    %s157 = scalar_select %p154, %s155, %s156
    %p160 = pneg %p154
    %p161 = scmp.eq.s32.totalorder %s14, 1
    %p162 = por %p160, %p161
    %p163 = scmp.ne.s32.totalorder %s155, %s158
    %p164 = scmp.eq.s32.totalorder %s14, 0
    %p165 = por %p163, %p164
    %p166 = scmp.ne.s32.totalorder %s155, %s158
    %p167 = scmp.eq.s32.totalorder %s19, 1
    %p168 = por %p166, %p167
    %p169 = scmp.ne.s32.totalorder %s158, %s159
    %p170 = scmp.eq.s32.totalorder %s19, 0
    %p171 = por %p169, %p170
    %p172 = scmp.ne.s32.totalorder %s158, %s159
    %p173 = scmp.eq.s32.totalorder %s20, 1
    %p174 = por %p172, %p173
    %p176 = scmp.ne.s32.totalorder %s159, %s175
    %p177 = scmp.eq.s32.totalorder %s20, 0
    %p178 = por %p176, %p177
    %p179 = scmp.le.s32.totalorder 1, %s14
    %p180 = scmp.lt.s32.totalorder %s14, 3
    %p181 = pnand %p179, %p180
    %p182 = pneg %p181
    // Predicated region
    $region9: #{skeleton_net2d_forward.1} parent=5 // pred_check
      _
    $region10: #{skeleton_net2d_forward.1} parent=5 // pred_check_branch
      %184 = sbr.rel (%p181) target = $region12
    $region11: #{skeleton_net2d_forward.1} parent=5 // pred_region
      %s185 = ssub.s32 %s14, 1
      // Predicated region
      $region13: #{skeleton_net2d_forward.1} parent=11 // pred_check
        %p186 = pneg %p61
      $region14: #{skeleton_net2d_forward.1} parent=11 // pred_check_branch
        %188 = sbr.rel (%p186) target = $region16
      $region15: #{skeleton_net2d_forward.1} parent=11 // pred_region
        _
      $region16: #{skeleton_net2d_forward.1} parent=11 // pred_fallthru
        _
      // Predicated region
      $region17: #{skeleton_net2d_forward.1} parent=11 // pred_check
        %p189 = pneg %p82
      $region18: #{skeleton_net2d_forward.1} parent=11 // pred_check_branch
        %191 = sbr.rel (%p189) target = $region20
      $region19: #{skeleton_net2d_forward.1} parent=11 // pred_region
        _
      $region20: #{skeleton_net2d_forward.1} parent=11 // pred_fallthru
        _
      // Predicated region
      $region21: #{skeleton_net2d_forward.1} parent=11 // pred_check
        %p192 = pneg %p103
      $region22: #{skeleton_net2d_forward.1} parent=11 // pred_check_branch
        %194 = sbr.rel (%p192) target = $region24
      $region23: #{skeleton_net2d_forward.1} parent=11 // pred_region
        _
      $region24: #{skeleton_net2d_forward.1} parent=11 // pred_fallthru
        _
      // Predicated region
      $region25: #{skeleton_net2d_forward.1} parent=11 // pred_check
        %p195 = pneg %p124
      $region26: #{skeleton_net2d_forward.1} parent=11 // pred_check_branch
        %197 = sbr.rel (%p195) target = $region28
      $region27: #{skeleton_net2d_forward.1} parent=11 // pred_region
        _
      $region28: #{skeleton_net2d_forward.1} parent=11 // pred_fallthru
        _
      // Predicated region
      $region29: #{skeleton_net2d_forward.1} parent=11 // pred_check
        %p198 = pneg %p145
      $region30: #{skeleton_net2d_forward.1} parent=11 // pred_check_branch
        %200 = sbr.rel (%p198) target = $region32
      $region31: #{skeleton_net2d_forward.1} parent=11 // pred_region
        _
      $region32: #{skeleton_net2d_forward.1} parent=11 // pred_fallthru
        _
    $region12: #{skeleton_net2d_forward.1} parent=5 // pred_fallthru
      _
    %p201 = scmp.lt.s32.totalorder %s14, 2
    // Predicated region
    $region33: #{skeleton_net2d_forward.1} parent=5 // pred_check
      %p202 = pneg %p201
    $region34: #{skeleton_net2d_forward.1} parent=5 // pred_check_branch
      %204 = sbr.rel (%p202) target = $region36
    $region35: #{skeleton_net2d_forward.1} parent=5 // pred_region
      // Predicated region
      $region37: #{skeleton_net2d_forward.1} parent=35 // pred_check
        %p205 = pneg %p34
      $region38: #{skeleton_net2d_forward.1} parent=35 // pred_check_branch
        %207 = sbr.rel (%p205) target = $region40
      $region39: #{skeleton_net2d_forward.1} parent=35 // pred_region
        %p208 = scmp.lt.s32.totalorder %s14, 1
        %s209 = scalar_select %p208, %s14, 1
        %s210 = smul.addr %s209, 3
        %s211 = scalar_lea.vmem %s0, %s210
      $region40: #{skeleton_net2d_forward.1} parent=35 // pred_fallthru
        _
    $region36: #{skeleton_net2d_forward.1} parent=5 // pred_fallthru
      _
    %p212 = scmp.le.s32.totalorder 1, %s14
    %p213 = scmp.lt.s32.totalorder %s14, 3
    %p214 = pnand %p212, %p213
    %p215 = pneg %p214
    // Predicated region
    $region41: #{skeleton_net2d_forward.1} parent=5 // pred_check
      _
    $region42: #{skeleton_net2d_forward.1} parent=5 // pred_check_branch
      %217 = sbr.rel (%p214) target = $region44
    $region43: #{skeleton_net2d_forward.1} parent=5 // pred_region
      %s218 = ssub.s32 %s14, 1
      %p219 = scmp.lt.s32.totalorder %s19, 1
      %s220 = scalar_select %p219, %s19, 1
      %s221 = smul.addr %s220, 3
      %s222 = scalar_lea.vmem %s0, %s221
      %p223 = pneg %p40
      %p224 = pneg %p37
      %p225 = pneg %p61
      %p226 = pneg %p58
      %p227 = pneg %p82
      %p228 = pneg %p79
      %p229 = pneg %p103
      %p230 = pneg %p100
      %p231 = pneg %p124
      %p232 = pneg %p121
      %p233 = pneg %p145
      %p234 = pneg %p142
      %p235 = pneg %p171
      %p236 = pneg %p168
      %p237 = scmp.lt.s32.totalorder %s19, 1
      %s238 = scalar_select %p237, %s19, 1
      %s239 = smul.addr %s238, 3
      %s240 = scalar_lea.vmem %s6, %s239
      %p241 = scmp.lt.s32.totalorder %s19, 1
      %s242 = scalar_select %p241, %s19, 1
      %s243 = smul.addr %s242, 3
      %s244 = scalar_lea.vmem %s0, %s243
      %p245 = scmp.lt.s32.totalorder %s19, 1
      %s246 = scalar_select %p245, %s19, 1
      %s247 = smul.addr %s246, 3
      %s248 = scalar_lea.vmem %s6, %s247
      %v249 = vlaneseq
      %vm250 = vcmp.ge.s32.totalorder %v249, 0
      %vm251 = vcmp.lt.s32.totalorder %v249, 342
      %vm252 = vmand %vm250, %vm251
      %253 = vst.msk [vmem:[#allocation2] sm:$0x7] %vm252, 0.0
      %254 = vst.msk [vmem:[#allocation3] sm:$0x7] %vm252, 0.0
      %v255 = vld [vmem:[%s2] sm:$0xff]
      %v256 = vld [vmem:[%s2 + $0x8] sm:$0xff]
      %v257 = vld [vmem:[%s2 + $0x10] sm:$0xff]
      %v258 = vld [vmem:[%s2 + $0x18] sm:$0xff]
      %v259 = vld [vmem:[%s2 + $0x20] sm:$0xff]
      %v260 = vld [vmem:[%s2 + $0x28] sm:$0xff]
      %v261 = vld [vmem:[%s2 + $0x30] sm:$0xff]
      %v262 = vld [vmem:[%s2 + $0x38] sm:$0xff]
      %v263 = vld [vmem:[%s2 + $0x40] sm:$0xff]
      %v264 = vld [vmem:[%s2 + $0x48] sm:$0xff]
      %v265 = vld [vmem:[%s2 + $0x50] sm:$0xff]
      %v266 = vld [vmem:[%s2 + $0x58] sm:$0xff]
      %v267 = vld [vmem:[%s2 + $0x60] sm:$0xff]
      %v268 = vld [vmem:[%s2 + $0x68] sm:$0xff]
      %v269 = vld [vmem:[%s2 + $0x70] sm:$0xff]
      %v270 = vld [vmem:[%s2 + $0x78] sm:$0xff]
      %v271 = vld [vmem:[%s3] sm:$0xff]
      %v272 = vld [vmem:[%s3 + $0x8] sm:$0xff]
      %v273 = vld [vmem:[%s3 + $0x10] sm:$0xff]
      %v274 = vld [vmem:[%s3 + $0x18] sm:$0xff]
      %v275 = vld [vmem:[%s3 + $0x20] sm:$0xff]
      %v276 = vld [vmem:[%s3 + $0x28] sm:$0xff]
      %v277 = vld [vmem:[%s3 + $0x30] sm:$0xff]
      %v278 = vld [vmem:[%s3 + $0x38] sm:$0xff]
      %v279 = vld [vmem:[%s3 + $0x40] sm:$0xff]
      %v280 = vld [vmem:[%s3 + $0x48] sm:$0xff]
      %v281 = vld [vmem:[%s3 + $0x50] sm:$0xff]
      %v282 = vld [vmem:[%s3 + $0x58] sm:$0xff]
      %v283 = vld [vmem:[%s3 + $0x60] sm:$0xff]
      %v284 = vld [vmem:[%s3 + $0x68] sm:$0xff]
      %v285 = vld [vmem:[%s3 + $0x70] sm:$0xff]
      %v286 = vld [vmem:[%s3 + $0x78] sm:$0xff]
      %v287 = vld [vmem:[%s4] sm:$0xff]
      %v288 = vld [vmem:[%s4 + $0x8] sm:$0xff]
      %v289 = vld [vmem:[%s4 + $0x10] sm:$0xff]
      %v290 = vld [vmem:[%s4 + $0x18] sm:$0xff]
      %v291 = vld [vmem:[%s4 + $0x20] sm:$0xff]
      %v292 = vld [vmem:[%s4 + $0x28] sm:$0xff]
      %v293 = vld [vmem:[%s4 + $0x30] sm:$0xff]
      %v294 = vld [vmem:[%s4 + $0x38] sm:$0xff]
      %v295 = vld [vmem:[%s4 + $0x40] sm:$0xff]
      %v296 = vld [vmem:[%s4 + $0x48] sm:$0xff]
      %v297 = vld [vmem:[%s4 + $0x50] sm:$0xff]
      %v298 = vld [vmem:[%s4 + $0x58] sm:$0xff]
      %v299 = vld [vmem:[%s4 + $0x60] sm:$0xff]
      %v300 = vld [vmem:[%s4 + $0x68] sm:$0xff]
      %v301 = vld [vmem:[%s4 + $0x70] sm:$0xff]
      %v302 = vld [vmem:[%s4 + $0x78] sm:$0xff]
      %v303 = vld [vmem:[#allocation5] sm:$0x1]
      %v304 = vld [vmem:[%s244] sm:$0x7]
      %vm305 = vcmp.lt.s32.totalorder %v249, 288
      %vm306 = vmand %vm250, %vm305
      %307 = vst.msk [vmem:[#allocation4] ss:$8 sm:$0x7] %vm306, %v304
      %308 = vst.msk [vmem:[#allocation4] ss:$8 sm:$0x0] %vm306, %v304
      %v309 = vld [vmem:[%s244] sm:$0x7]
      %311 = vrot.lane.b32.xlu0 %v309, 127
      %v312 = vpop.permute.xlu0 %311
      %v313 = vrot.slane %v312, 1
      %vm314 = vcmask 1039360
      %v315 = vsel %vm314, %v312, %v313
      %s317 = scalar_lea.vmem [#allocation4], 1
      %318 = vst.msk [vmem:[%s317] ss:$8 sm:$0x7] %vm306, %v315
      %319 = vst.msk [vmem:[%s317] ss:$8 sm:$0x0] %vm306, %v315
      %v320 = vld [vmem:[%s244] sm:$0x7]
      %322 = vrot.lane.b32.xlu0 %v320, 126
      %v323 = vpop.permute.xlu0 %322
      %v324 = vrot.slane %v323, 1
      %vm325 = vcmask 1031168
      %v326 = vsel %vm325, %v323, %v324
      %s328 = scalar_lea.vmem [#allocation4], 2
      %329 = vst.msk [vmem:[%s328] ss:$8 sm:$0x7] %vm306, %v326
      %330 = vst.msk [vmem:[%s328] ss:$8 sm:$0x0] %vm306, %v326
      %v331 = vld [vmem:[%s244] sm:$0x7]
      %333 = vrot.lane.b32.xlu0 %v331, 110
      %v334 = vpop.permute.xlu0 %333
      %v335 = vrot.slane %v334, 1
      %vm336 = vcmask 900096
      %v337 = vsel %vm336, %v334, %v335
      %s339 = scalar_lea.vmem [#allocation4], 3
      %340 = vst.msk [vmem:[%s339] ss:$8 sm:$0x7] %vm306, %v337
      %341 = vst.msk [vmem:[%s339] ss:$8 sm:$0x0] %vm306, %v337
      %v342 = vld [vmem:[%s244] sm:$0x7]
      %344 = vrot.lane.b32.xlu0 %v342, 109
      %v345 = vpop.permute.xlu0 %344
      %v346 = vrot.slane %v345, 1
      %vm347 = vcmask 891904
      %v348 = vsel %vm347, %v345, %v346
      %s350 = scalar_lea.vmem [#allocation4], 4
      %351 = vst.msk [vmem:[%s350] ss:$8 sm:$0x7] %vm306, %v348
      %352 = vst.msk [vmem:[%s350] ss:$8 sm:$0x0] %vm306, %v348
      %v353 = vld [vmem:[%s244] sm:$0x7]
      %355 = vrot.lane.b32.xlu0 %v353, 108
      %v356 = vpop.permute.xlu0 %355
      %v357 = vrot.slane %v356, 1
      %vm358 = vcmask 883712
      %v359 = vsel %vm358, %v356, %v357
      %s361 = scalar_lea.vmem [#allocation4], 5
      %362 = vst.msk [vmem:[%s361] ss:$8 sm:$0x7] %vm306, %v359
      %363 = vst.msk [vmem:[%s361] ss:$8 sm:$0x0] %vm306, %v359
      %v364 = vld [vmem:[%s244] sm:$0x7]
      %366 = vrot.lane.b32.xlu0 %v364, 92
      %v367 = vpop.permute.xlu0 %366
      %v368 = vrot.slane %v367, 1
      %vm369 = vcmask 752640
      %v370 = vsel %vm369, %v367, %v368
      %s372 = scalar_lea.vmem [#allocation4], 6
      %373 = vst.msk [vmem:[%s372] ss:$8 sm:$0x7] %vm306, %v370
      %374 = vst.msk [vmem:[%s372] ss:$8 sm:$0x0] %vm306, %v370
      %v375 = vld [vmem:[%s244] sm:$0x7]
      %377 = vrot.lane.b32.xlu0 %v375, 91
      %v378 = vpop.permute.xlu0 %377
      %v379 = vrot.slane %v378, 1
      %vm380 = vcmask 744448
      %v381 = vsel %vm380, %v378, %v379
      %s383 = scalar_lea.vmem [#allocation4], 7
      %384 = vst.msk [vmem:[%s383] ss:$8 sm:$0x7] %vm306, %v381
      %385 = vst.msk [vmem:[%s383] ss:$8 sm:$0x0] %vm306, %v381
      %v386 = vld [vmem:[%s244] sm:$0x7]
      %388 = vrot.lane.b32.xlu0 %v386, 90
      %v389 = vpop.permute.xlu0 %388
      %v390 = vrot.slane %v389, 1
      %vm391 = vcmask 736256
      %v392 = vsel %vm391, %v389, %v390
      %s394 = scalar_lea.vmem [#allocation4], 24
      %395 = vst.msk [vmem:[%s394] ss:$8 sm:$0x7] %vm306, %v392
      %396 = vst.msk [vmem:[%s394] ss:$8 sm:$0x0] %vm306, %v392
      %v397 = vld [vmem:[#allocation4] sm:$0xff]
      %v398 = vld [vmem:[#allocation4 + $0x8] sm:$0xff]
      %v399 = vld [vmem:[#allocation4 + $0x10] sm:$0xff]
      %v400 = vld [vmem:[#allocation4 + $0x18] sm:$0x1]
      %v401 = vld [vmem:[#allocation4 + $0x20] sm:$0x1]
      %v402 = vld [vmem:[#allocation4 + $0x28] sm:$0x1]
      %404 = vset.pattern.permute.xlu0 0
      %405 = vperm.xlu0 %404, %v271
      %v406 = vpop.permute.xlu0 %405
      %409 = vset.pattern.permute.xlu0 0
      %410 = vperm.xlu0 %409, %v272
      %v411 = vpop.permute.xlu0 %410
      %414 = vset.pattern.permute.xlu0 0
      %415 = vperm.xlu0 %414, %v273
      %v416 = vpop.permute.xlu0 %415
      %419 = vset.pattern.permute.xlu0 0
      %420 = vperm.xlu0 %419, %v274
      %v421 = vpop.permute.xlu0 %420
      %424 = vset.pattern.permute.xlu0 0
      %425 = vperm.xlu0 %424, %v275
      %v426 = vpop.permute.xlu0 %425
      %429 = vset.pattern.permute.xlu0 0
      %430 = vperm.xlu0 %429, %v276
      %v431 = vpop.permute.xlu0 %430
      %434 = vset.pattern.permute.xlu0 0
      %435 = vperm.xlu0 %434, %v277
      %v436 = vpop.permute.xlu0 %435
      %439 = vset.pattern.permute.xlu0 0
      %440 = vperm.xlu0 %439, %v278
      %v441 = vpop.permute.xlu0 %440
      %444 = vset.pattern.permute.xlu0 0
      %445 = vperm.xlu0 %444, %v279
      %v446 = vpop.permute.xlu0 %445
      %449 = vset.pattern.permute.xlu0 0
      %450 = vperm.xlu0 %449, %v280
      %v451 = vpop.permute.xlu0 %450
      %454 = vset.pattern.permute.xlu0 0
      %455 = vperm.xlu0 %454, %v281
      %v456 = vpop.permute.xlu0 %455
      %459 = vset.pattern.permute.xlu0 0
      %460 = vperm.xlu0 %459, %v282
      %v461 = vpop.permute.xlu0 %460
      %464 = vset.pattern.permute.xlu0 0
      %465 = vperm.xlu0 %464, %v283
      %v466 = vpop.permute.xlu0 %465
      %469 = vset.pattern.permute.xlu0 0
      %470 = vperm.xlu0 %469, %v284
      %v471 = vpop.permute.xlu0 %470
      %474 = vset.pattern.permute.xlu0 0
      %475 = vperm.xlu0 %474, %v285
      %v476 = vpop.permute.xlu0 %475
      %479 = vset.pattern.permute.xlu0 0
      %480 = vperm.xlu0 %479, %v286
      %v481 = vpop.permute.xlu0 %480
      %vm483 = vcmask 72704
      %v485 = vsel %vm483, %v255, 0
      %v488 = vsel %vm483, %v256, 0
      %v491 = vsel %vm483, %v257, 0
      %v494 = vsel %vm483, %v258, 0
      %v497 = vsel %vm483, %v259, 0
      %v500 = vsel %vm483, %v260, 0
      %v503 = vsel %vm483, %v261, 0
      %v506 = vsel %vm483, %v262, 0
      %v509 = vsel %vm483, %v263, 0
      %v512 = vsel %vm483, %v264, 0
      %v515 = vsel %vm483, %v265, 0
      %v518 = vsel %vm483, %v266, 0
      %v521 = vsel %vm483, %v267, 0
      %v524 = vsel %vm483, %v268, 0
      %v527 = vsel %vm483, %v269, 0
      %v530 = vsel %vm483, %v270, 0
      %vm532 = vcmask 1040384
      %v534 = vsel %vm532, %v400, 0
      %v537 = vsel %vm532, %v401, 0
      %v540 = vsel %vm532, %v402, 0
      %542 = vmatprep.subr.mxu0 0.0
      %543 = vmatpush1.msra.mxu0 0.0
      %544 = vmatprep.subr.mxu0 0.0
      %545 = vmatpush1.msra.mxu0 0.0
      %546 = vmatprep.subr.mxu0 0.0
      %547 = vmatpush1.msra.mxu0 0.0
      %548 = vmatprep.subr.mxu0 0.0
      %549 = vmatpush1.msra.mxu0 0.0
      %550 = vmatprep.subr.mxu0 0.0
      %551 = vmatpush1.msra.mxu0 0.0
      %552 = vmatprep.subr.mxu0 0.0
      %553 = vmatpush1.msra.mxu0 0.0
      %554 = vmatprep.subr.mxu0 0.0
      %555 = vmatpush1.msra.mxu0 0.0
      %556 = vmatprep.subr.mxu0 0.0
      %557 = vmatpush1.msra.mxu0 0.0
      %558 = vmatprep.subr.mxu0 0.0
      %559 = vmatpush1.msra.mxu0 0.0
      %560 = vmatprep.subr.mxu0 0.0
      %561 = vmatpush1.msra.mxu0 0.0
      %562 = vmatprep.subr.mxu0 0.0
      %563 = vmatpush1.msra.mxu0 0.0
      %564 = vmatprep.subr.mxu0 0.0
      %565 = vmatpush1.msra.mxu0 0.0
      %566 = vmatprep.subr.mxu0 0.0
      %567 = vmatpush1.msra.mxu0 0.0
      %568 = vmatprep.subr.mxu0 0.0
      %569 = vmatpush1.msra.mxu0 0.0
      %570 = vmatprep.subr.mxu0 %v537
      %571 = vmatpush1.msra.mxu0 %v534
      %572 = vmatprep.subr.mxu0 %v398
      %573 = vmatpush1.msra.mxu0 %v397
      %574 = vmatprep.subr.mxu0 0.0
      %575 = vmatpush2.msra.mxu0 0.0
      %576 = vmatprep.subr.mxu0 0.0
      %577 = vmatpush2.msra.mxu0 0.0
      %578 = vmatprep.subr.mxu0 0.0
      %579 = vmatpush2.msra.mxu0 0.0
      %580 = vmatprep.subr.mxu0 0.0
      %581 = vmatpush2.msra.mxu0 0.0
      %582 = vmatprep.subr.mxu0 0.0
      %583 = vmatpush2.msra.mxu0 0.0
      %584 = vmatprep.subr.mxu0 0.0
      %585 = vmatpush2.msra.mxu0 0.0
      %586 = vmatprep.subr.mxu0 0.0
      %587 = vmatpush2.msra.mxu0 0.0
      %588 = vmatprep.subr.mxu0 0.0
      %589 = vmatpush2.msra.mxu0 0.0
      %590 = vmatprep.subr.mxu0 0.0
      %591 = vmatpush2.msra.mxu0 0.0
      %592 = vmatprep.subr.mxu0 0.0
      %593 = vmatpush2.msra.mxu0 0.0
      %594 = vmatprep.subr.mxu0 0.0
      %595 = vmatpush2.msra.mxu0 0.0
      %596 = vmatprep.subr.mxu0 0.0
      %597 = vmatpush2.msra.mxu0 0.0
      %598 = vmatprep.subr.mxu0 0.0
      %599 = vmatpush2.msra.mxu0 0.0
      %600 = vmatprep.subr.mxu0 0.0
      %601 = vmatpush2.msra.mxu0 0.0
      %602 = vmatprep.subr.mxu0 0.0
      %603 = vmatpush2.msra.mxu0 0.0
      %604 = vmatprep.subr.mxu0 0.0
      %605 = vmatpush2.msra.mxu0 0.0
      %606 = vmatprep.mubr.f32.mxu0 0.0
      %607 = vmatmul.mubr.f32.gmra.mxu0 %v485
      %v608 = vpop.f32.mrf.mxu0
      %v609 = vadd.f32 %v406, %v608
      %v610 = vpop.f32.mrf.mxu0
      %v611 = vadd.f32 %v406, %v610
      %612 = vmatprep.mubr.f32.mxu0 0.0
      %613 = vmatmul.mubr.f32.gmra.mxu0 %v488
      %v614 = vpop.f32.mrf.mxu0
      %v615 = vadd.f32 %v411, %v614
      %v616 = vpop.f32.mrf.mxu0
      %v617 = vadd.f32 %v411, %v616
      %618 = vmatprep.mubr.f32.mxu0 0.0
      %619 = vmatmul.mubr.f32.gmra.mxu0 %v491
      %v620 = vpop.f32.mrf.mxu0
      %v621 = vadd.f32 %v416, %v620
      %v622 = vpop.f32.mrf.mxu0
      %v623 = vadd.f32 %v416, %v622
      %624 = vmatprep.mubr.f32.mxu0 0.0
      %625 = vmatmul.mubr.f32.gmra.mxu0 %v494
      %v626 = vpop.f32.mrf.mxu0
      %v627 = vadd.f32 %v421, %v626
      %v628 = vpop.f32.mrf.mxu0
      %v629 = vadd.f32 %v421, %v628
      %630 = vmatprep.mubr.f32.mxu0 0.0
      %631 = vmatmul.mubr.f32.gmra.mxu0 %v497
      %v632 = vpop.f32.mrf.mxu0
      %v633 = vadd.f32 %v426, %v632
      %v634 = vpop.f32.mrf.mxu0
      %v635 = vadd.f32 %v426, %v634
      %636 = vmatprep.mubr.f32.mxu0 0.0
      %637 = vmatmul.mubr.f32.gmra.mxu0 %v500
      %v638 = vpop.f32.mrf.mxu0
      %v639 = vadd.f32 %v431, %v638
      %v640 = vpop.f32.mrf.mxu0
      %v641 = vadd.f32 %v431, %v640
      %642 = vmatprep.mubr.f32.mxu0 0.0
      %643 = vmatmul.mubr.f32.gmra.mxu0 %v503
      %v644 = vpop.f32.mrf.mxu0
      %v645 = vadd.f32 %v436, %v644
      %v646 = vpop.f32.mrf.mxu0
      %v647 = vadd.f32 %v436, %v646
      %648 = vmatprep.mubr.f32.mxu0 0.0
      %649 = vmatmul.mubr.f32.gmra.mxu0 %v506
      %v650 = vpop.f32.mrf.mxu0
      %v651 = vadd.f32 %v441, %v650
      %v652 = vpop.f32.mrf.mxu0
      %v653 = vadd.f32 %v441, %v652
      %654 = vmatprep.mubr.f32.mxu0 0.0
      %655 = vmatmul.mubr.f32.gmra.mxu0 %v509
      %v656 = vpop.f32.mrf.mxu0
      %v657 = vadd.f32 %v446, %v656
      %v658 = vpop.f32.mrf.mxu0
      %v659 = vadd.f32 %v446, %v658
      %660 = vmatprep.mubr.f32.mxu0 0.0
      %661 = vmatmul.mubr.f32.gmra.mxu0 %v512
      %v662 = vpop.f32.mrf.mxu0
      %v663 = vadd.f32 %v451, %v662
      %v664 = vpop.f32.mrf.mxu0
      %v665 = vadd.f32 %v451, %v664
      %666 = vmatprep.mubr.f32.mxu0 0.0
      %667 = vmatmul.mubr.f32.gmra.mxu0 %v515
      %v668 = vpop.f32.mrf.mxu0
      %v669 = vadd.f32 %v456, %v668
      %v670 = vpop.f32.mrf.mxu0
      %v671 = vadd.f32 %v456, %v670
      %672 = vmatprep.mubr.f32.mxu0 0.0
      %673 = vmatmul.mubr.f32.gmra.mxu0 %v518
      %v674 = vpop.f32.mrf.mxu0
      %v675 = vadd.f32 %v461, %v674
      %v676 = vpop.f32.mrf.mxu0
      %v677 = vadd.f32 %v461, %v676
      %678 = vmatprep.mubr.f32.mxu0 0.0
      %679 = vmatmul.mubr.f32.gmra.mxu0 %v521
      %v680 = vpop.f32.mrf.mxu0
      %v681 = vadd.f32 %v466, %v680
      %v682 = vpop.f32.mrf.mxu0
      %v683 = vadd.f32 %v466, %v682
      %684 = vmatprep.mubr.f32.mxu0 0.0
      %685 = vmatmul.mubr.f32.gmra.mxu0 %v524
      %v686 = vpop.f32.mrf.mxu0
      %v687 = vadd.f32 %v471, %v686
      %v688 = vpop.f32.mrf.mxu0
      %v689 = vadd.f32 %v471, %v688
      %690 = vmatprep.mubr.f32.mxu0 0.0
      %691 = vmatmul.mubr.f32.gmra.mxu0 %v527
      %v692 = vpop.f32.mrf.mxu0
      %v693 = vadd.f32 %v476, %v692
      %v694 = vpop.f32.mrf.mxu0
      %v695 = vadd.f32 %v476, %v694
      %696 = vmatprep.mubr.f32.mxu0 0.0
      %697 = vmatmul.mubr.f32.gmra.mxu0 %v530
      %v698 = vpop.f32.mrf.mxu0
      %v699 = vadd.f32 %v481, %v698
      %v700 = vpop.f32.mrf.mxu0
      %v701 = vadd.f32 %v481, %v700
      %702 = vdwg.mxu0
      %703 = vmatprep.subr.mxu0 0.0
      %704 = vmatpush1.msra.mxu0 0.0
      %705 = vmatprep.subr.mxu0 0.0
      %706 = vmatpush1.msra.mxu0 0.0
      %707 = vmatprep.subr.mxu0 0.0
      %708 = vmatpush1.msra.mxu0 0.0
      %709 = vmatprep.subr.mxu0 0.0
      %710 = vmatpush1.msra.mxu0 0.0
      %711 = vmatprep.subr.mxu0 0.0
      %712 = vmatpush1.msra.mxu0 0.0
      %713 = vmatprep.subr.mxu0 0.0
      %714 = vmatpush1.msra.mxu0 0.0
      %715 = vmatprep.subr.mxu0 0.0
      %716 = vmatpush1.msra.mxu0 0.0
      %717 = vmatprep.subr.mxu0 0.0
      %718 = vmatpush1.msra.mxu0 0.0
      %719 = vmatprep.subr.mxu0 0.0
      %720 = vmatpush1.msra.mxu0 0.0
      %721 = vmatprep.subr.mxu0 0.0
      %722 = vmatpush1.msra.mxu0 0.0
      %723 = vmatprep.subr.mxu0 0.0
      %724 = vmatpush1.msra.mxu0 0.0
      %725 = vmatprep.subr.mxu0 0.0
      %726 = vmatpush1.msra.mxu0 0.0
      %727 = vmatprep.subr.mxu0 0.0
      %728 = vmatpush1.msra.mxu0 0.0
      %729 = vmatprep.subr.mxu0 0.0
      %730 = vmatpush1.msra.mxu0 0.0
      %731 = vmatprep.subr.mxu0 0.0
      %732 = vmatpush1.msra.mxu0 %v540
      %733 = vmatprep.subr.mxu0 0.0
      %734 = vmatpush1.msra.mxu0 %v399
      %735 = vmatprep.subr.mxu0 0.0
      %736 = vmatpush2.msra.mxu0 0.0
      %737 = vmatprep.subr.mxu0 0.0
      %738 = vmatpush2.msra.mxu0 0.0
      %739 = vmatprep.subr.mxu0 0.0
      %740 = vmatpush2.msra.mxu0 0.0
      %741 = vmatprep.subr.mxu0 0.0
      %742 = vmatpush2.msra.mxu0 0.0
      %743 = vmatprep.subr.mxu0 0.0
      %744 = vmatpush2.msra.mxu0 0.0
      %745 = vmatprep.subr.mxu0 0.0
      %746 = vmatpush2.msra.mxu0 0.0
      %747 = vmatprep.subr.mxu0 0.0
      %748 = vmatpush2.msra.mxu0 0.0
      %749 = vmatprep.subr.mxu0 0.0
      %750 = vmatpush2.msra.mxu0 0.0
      %751 = vmatprep.subr.mxu0 0.0
      %752 = vmatpush2.msra.mxu0 0.0
      %753 = vmatprep.subr.mxu0 0.0
      %754 = vmatpush2.msra.mxu0 0.0
      %755 = vmatprep.subr.mxu0 0.0
      %756 = vmatpush2.msra.mxu0 0.0
      %757 = vmatprep.subr.mxu0 0.0
      %758 = vmatpush2.msra.mxu0 0.0
      %759 = vmatprep.subr.mxu0 0.0
      %760 = vmatpush2.msra.mxu0 0.0
      %761 = vmatprep.subr.mxu0 0.0
      %762 = vmatpush2.msra.mxu0 0.0
      %763 = vmatprep.subr.mxu0 0.0
      %764 = vmatpush2.msra.mxu0 0.0
      %765 = vmatprep.subr.mxu0 0.0
      %766 = vmatpush2.msra.mxu0 0.0
      %767 = vmatprep.mubr.f32.mxu0 0.0
      %768 = vmatmul.mubr.f32.gmra.mxu0 %v485
      %v769 = vpop.f32.mrf.mxu0
      %v770 = vadd.f32 %v406, %v769
      %v771 = vpop.f32.mrf.mxu0
      %772 = vmatprep.mubr.f32.mxu0 0.0
      %773 = vmatmul.mubr.f32.gmra.mxu0 %v488
      %v774 = vpop.f32.mrf.mxu0
      %v775 = vadd.f32 %v411, %v774
      %v776 = vpop.f32.mrf.mxu0
      %777 = vmatprep.mubr.f32.mxu0 0.0
      %778 = vmatmul.mubr.f32.gmra.mxu0 %v491
      %v779 = vpop.f32.mrf.mxu0
      %v780 = vadd.f32 %v416, %v779
      %v781 = vpop.f32.mrf.mxu0
      %782 = vmatprep.mubr.f32.mxu0 0.0
      %783 = vmatmul.mubr.f32.gmra.mxu0 %v494
      %v784 = vpop.f32.mrf.mxu0
      %v785 = vadd.f32 %v421, %v784
      %v786 = vpop.f32.mrf.mxu0
      %787 = vmatprep.mubr.f32.mxu0 0.0
      %788 = vmatmul.mubr.f32.gmra.mxu0 %v497
      %v789 = vpop.f32.mrf.mxu0
      %v790 = vadd.f32 %v426, %v789
      %v791 = vpop.f32.mrf.mxu0
      %792 = vmatprep.mubr.f32.mxu0 0.0
      %793 = vmatmul.mubr.f32.gmra.mxu0 %v500
      %v794 = vpop.f32.mrf.mxu0
      %v795 = vadd.f32 %v431, %v794
      %v796 = vpop.f32.mrf.mxu0
      %797 = vmatprep.mubr.f32.mxu0 0.0
      %798 = vmatmul.mubr.f32.gmra.mxu0 %v503
      %v799 = vpop.f32.mrf.mxu0
      %v800 = vadd.f32 %v436, %v799
      %v801 = vpop.f32.mrf.mxu0
      %802 = vmatprep.mubr.f32.mxu0 0.0
      %803 = vmatmul.mubr.f32.gmra.mxu0 %v506
      %v804 = vpop.f32.mrf.mxu0
      %v805 = vadd.f32 %v441, %v804
      %v806 = vpop.f32.mrf.mxu0
      %807 = vmatprep.mubr.f32.mxu0 0.0
      %808 = vmatmul.mubr.f32.gmra.mxu0 %v509
      %v809 = vpop.f32.mrf.mxu0
      %v810 = vadd.f32 %v446, %v809
      %v811 = vpop.f32.mrf.mxu0
      %812 = vmatprep.mubr.f32.mxu0 0.0
      %813 = vmatmul.mubr.f32.gmra.mxu0 %v512
      %v814 = vpop.f32.mrf.mxu0
      %v815 = vadd.f32 %v451, %v814
      %v816 = vpop.f32.mrf.mxu0
      %817 = vmatprep.mubr.f32.mxu0 0.0
      %818 = vmatmul.mubr.f32.gmra.mxu0 %v515
      %v819 = vpop.f32.mrf.mxu0
      %v820 = vadd.f32 %v456, %v819
      %v821 = vpop.f32.mrf.mxu0
      %822 = vmatprep.mubr.f32.mxu0 0.0
      %823 = vmatmul.mubr.f32.gmra.mxu0 %v518
      %v824 = vpop.f32.mrf.mxu0
      %v825 = vadd.f32 %v461, %v824
      %v826 = vpop.f32.mrf.mxu0
      %827 = vmatprep.mubr.f32.mxu0 0.0
      %828 = vmatmul.mubr.f32.gmra.mxu0 %v521
      %v829 = vpop.f32.mrf.mxu0
      %v830 = vadd.f32 %v466, %v829
      %v831 = vpop.f32.mrf.mxu0
      %832 = vmatprep.mubr.f32.mxu0 0.0
      %833 = vmatmul.mubr.f32.gmra.mxu0 %v524
      %v834 = vpop.f32.mrf.mxu0
      %v835 = vadd.f32 %v471, %v834
      %v836 = vpop.f32.mrf.mxu0
      %837 = vmatprep.mubr.f32.mxu0 0.0
      %838 = vmatmul.mubr.f32.gmra.mxu0 %v527
      %v839 = vpop.f32.mrf.mxu0
      %v840 = vadd.f32 %v476, %v839
      %v841 = vpop.f32.mrf.mxu0
      %842 = vmatprep.mubr.f32.mxu0 0.0
      %843 = vmatmul.mubr.f32.gmra.mxu0 %v530
      %v844 = vpop.f32.mrf.mxu0
      %v845 = vadd.f32 %v481, %v844
      %v846 = vpop.f32.mrf.mxu0
      %847 = vdwg.mxu0
      %v848 = vmax.f32 %v609, 0.0
      %v849 = vmax.f32 %v611, 0.0
      %v850 = vmax.f32 %v770, 0.0
      %v851 = vmax.f32 %v615, 0.0
      %v852 = vmax.f32 %v617, 0.0
      %v853 = vmax.f32 %v775, 0.0
      %v854 = vmax.f32 %v621, 0.0
      %v855 = vmax.f32 %v623, 0.0
      %v856 = vmax.f32 %v780, 0.0
      %v857 = vmax.f32 %v627, 0.0
      %v858 = vmax.f32 %v629, 0.0
      %v859 = vmax.f32 %v785, 0.0
      %v860 = vmax.f32 %v633, 0.0
      %v861 = vmax.f32 %v635, 0.0
      %v862 = vmax.f32 %v790, 0.0
      %v863 = vmax.f32 %v639, 0.0
      %v864 = vmax.f32 %v641, 0.0
      %v865 = vmax.f32 %v795, 0.0
      %v866 = vmax.f32 %v645, 0.0
      %v867 = vmax.f32 %v647, 0.0
      %v868 = vmax.f32 %v800, 0.0
      %v869 = vmax.f32 %v651, 0.0
      %v870 = vmax.f32 %v653, 0.0
      %v871 = vmax.f32 %v805, 0.0
      %v872 = vmax.f32 %v657, 0.0
      %v873 = vmax.f32 %v659, 0.0
      %v874 = vmax.f32 %v810, 0.0
      %v875 = vmax.f32 %v663, 0.0
      %v876 = vmax.f32 %v665, 0.0
      %v877 = vmax.f32 %v815, 0.0
      %v878 = vmax.f32 %v669, 0.0
      %v879 = vmax.f32 %v671, 0.0
      %v880 = vmax.f32 %v820, 0.0
      %v881 = vmax.f32 %v675, 0.0
      %v882 = vmax.f32 %v677, 0.0
      %v883 = vmax.f32 %v825, 0.0
      %v884 = vmax.f32 %v681, 0.0
      %v885 = vmax.f32 %v683, 0.0
      %v886 = vmax.f32 %v830, 0.0
      %v887 = vmax.f32 %v687, 0.0
      %v888 = vmax.f32 %v689, 0.0
      %v889 = vmax.f32 %v835, 0.0
      %v890 = vmax.f32 %v693, 0.0
      %v891 = vmax.f32 %v695, 0.0
      %v892 = vmax.f32 %v840, 0.0
      %v893 = vmax.f32 %v699, 0.0
      %v894 = vmax.f32 %v701, 0.0
      %v895 = vmax.f32 %v845, 0.0
      %897 = vset.pattern.permute.xlu0 0
      %898 = vperm.xlu0 %897, %v287
      %v899 = vpop.permute.xlu0 %898
      %902 = vset.pattern.permute.xlu0 0
      %903 = vperm.xlu0 %902, %v288
      %v904 = vpop.permute.xlu0 %903
      %907 = vset.pattern.permute.xlu0 0
      %908 = vperm.xlu0 %907, %v289
      %v909 = vpop.permute.xlu0 %908
      %912 = vset.pattern.permute.xlu0 0
      %913 = vperm.xlu0 %912, %v290
      %v914 = vpop.permute.xlu0 %913
      %917 = vset.pattern.permute.xlu0 0
      %918 = vperm.xlu0 %917, %v291
      %v919 = vpop.permute.xlu0 %918
      %922 = vset.pattern.permute.xlu0 0
      %923 = vperm.xlu0 %922, %v292
      %v924 = vpop.permute.xlu0 %923
      %927 = vset.pattern.permute.xlu0 0
      %928 = vperm.xlu0 %927, %v293
      %v929 = vpop.permute.xlu0 %928
      %932 = vset.pattern.permute.xlu0 0
      %933 = vperm.xlu0 %932, %v294
      %v934 = vpop.permute.xlu0 %933
      %937 = vset.pattern.permute.xlu0 0
      %938 = vperm.xlu0 %937, %v295
      %v939 = vpop.permute.xlu0 %938
      %942 = vset.pattern.permute.xlu0 0
      %943 = vperm.xlu0 %942, %v296
      %v944 = vpop.permute.xlu0 %943
      %947 = vset.pattern.permute.xlu0 0
      %948 = vperm.xlu0 %947, %v297
      %v949 = vpop.permute.xlu0 %948
      %952 = vset.pattern.permute.xlu0 0
      %953 = vperm.xlu0 %952, %v298
      %v954 = vpop.permute.xlu0 %953
      %957 = vset.pattern.permute.xlu0 0
      %958 = vperm.xlu0 %957, %v299
      %v959 = vpop.permute.xlu0 %958
      %962 = vset.pattern.permute.xlu0 0
      %963 = vperm.xlu0 %962, %v300
      %v964 = vpop.permute.xlu0 %963
      %967 = vset.pattern.permute.xlu0 0
      %968 = vperm.xlu0 %967, %v301
      %v969 = vpop.permute.xlu0 %968
      %972 = vset.pattern.permute.xlu0 0
      %973 = vperm.xlu0 %972, %v302
      %v974 = vpop.permute.xlu0 %973
      %v976 = vmul.f32 %v848, %v899
      %v977 = vmul.f32 %v849, %v899
      %v978 = vmul.f32 %v850, %v899
      %v979 = vmul.f32 %v851, %v904
      %v980 = vmul.f32 %v852, %v904
      %v981 = vmul.f32 %v853, %v904
      %v982 = vmul.f32 %v854, %v909
      %v983 = vmul.f32 %v855, %v909
      %v984 = vmul.f32 %v856, %v909
      %v985 = vmul.f32 %v857, %v914
      %v986 = vmul.f32 %v858, %v914
      %v987 = vmul.f32 %v859, %v914
      %v988 = vmul.f32 %v860, %v919
      %v989 = vmul.f32 %v861, %v919
      %v990 = vmul.f32 %v862, %v919
      %v991 = vmul.f32 %v863, %v924
      %v992 = vmul.f32 %v864, %v924
      %v993 = vmul.f32 %v865, %v924
      %v994 = vmul.f32 %v866, %v929
      %v995 = vmul.f32 %v867, %v929
      %v996 = vmul.f32 %v868, %v929
      %v997 = vmul.f32 %v869, %v934
      %v998 = vmul.f32 %v870, %v934
      %v999 = vmul.f32 %v871, %v934
      %v1000 = vmul.f32 %v872, %v939
      %v1001 = vmul.f32 %v873, %v939
      %v1002 = vmul.f32 %v874, %v939
      %v1003 = vmul.f32 %v875, %v944
      %v1004 = vmul.f32 %v876, %v944
      %v1005 = vmul.f32 %v877, %v944
      %v1006 = vmul.f32 %v878, %v949
      %v1007 = vmul.f32 %v879, %v949
      %v1008 = vmul.f32 %v880, %v949
      %v1009 = vmul.f32 %v881, %v954
      %v1010 = vmul.f32 %v882, %v954
      %v1011 = vmul.f32 %v883, %v954
      %v1012 = vmul.f32 %v884, %v959
      %v1013 = vmul.f32 %v885, %v959
      %v1014 = vmul.f32 %v886, %v959
      %v1015 = vmul.f32 %v887, %v964
      %v1016 = vmul.f32 %v888, %v964
      %v1017 = vmul.f32 %v889, %v964
      %v1018 = vmul.f32 %v890, %v969
      %v1019 = vmul.f32 %v891, %v969
      %v1020 = vmul.f32 %v892, %v969
      %v1021 = vmul.f32 %v893, %v974
      %v1022 = vmul.f32 %v894, %v974
      %v1023 = vmul.f32 %v895, %v974
      %v1024 = vadd.f32 %v976, %v979
      %v1025 = vadd.f32 %v1024, %v982
      %v1026 = vadd.f32 %v1025, %v985
      %v1027 = vadd.f32 %v1026, %v988
      %v1028 = vadd.f32 %v1027, %v991
      %v1029 = vadd.f32 %v1028, %v994
      %v1030 = vadd.f32 %v1029, %v997
      %v1031 = vadd.f32 %v1030, %v1000
      %v1032 = vadd.f32 %v1031, %v1003
      %v1033 = vadd.f32 %v1032, %v1006
      %v1034 = vadd.f32 %v1033, %v1009
      %v1035 = vadd.f32 %v1034, %v1012
      %v1036 = vadd.f32 %v1035, %v1015
      %v1037 = vadd.f32 %v1036, %v1018
      %v1038 = vadd.f32 %v1037, %v1021
      %v1039 = vrot.slane %v1038, 4
      %v1040 = vadd.f32 %v1038, %v1039
      %v1041 = vrot.slane %v1040, 2
      %v1042 = vadd.f32 %v1040, %v1041
      %v1043 = vrot.slane %v1042, 1
      %v1044 = vadd.f32 %v1042, %v1043
      %v1045 = vadd.f32 %v977, %v980
      %v1046 = vadd.f32 %v1045, %v983
      %v1047 = vadd.f32 %v1046, %v986
      %v1048 = vadd.f32 %v1047, %v989
      %v1049 = vadd.f32 %v1048, %v992
      %v1050 = vadd.f32 %v1049, %v995
      %v1051 = vadd.f32 %v1050, %v998
      %v1052 = vadd.f32 %v1051, %v1001
      %v1053 = vadd.f32 %v1052, %v1004
      %v1054 = vadd.f32 %v1053, %v1007
      %v1055 = vadd.f32 %v1054, %v1010
      %v1056 = vadd.f32 %v1055, %v1013
      %v1057 = vadd.f32 %v1056, %v1016
      %v1058 = vadd.f32 %v1057, %v1019
      %v1059 = vadd.f32 %v1058, %v1022
      %v1060 = vrot.slane %v1059, 4
      %v1061 = vadd.f32 %v1059, %v1060
      %v1062 = vrot.slane %v1061, 2
      %v1063 = vadd.f32 %v1061, %v1062
      %v1064 = vrot.slane %v1063, 1
      %v1065 = vadd.f32 %v1063, %v1064
      %vm1066 = vcmask 261120
      %v1067 = vsel %vm1066, %v978, 0.0
      %v1068 = vsel %vm1066, %v981, 0.0
      %v1069 = vadd.f32 %v1067, %v1068
      %v1070 = vsel %vm1066, %v984, 0.0
      %v1071 = vadd.f32 %v1069, %v1070
      %v1072 = vsel %vm1066, %v987, 0.0
      %v1073 = vadd.f32 %v1071, %v1072
      %v1074 = vsel %vm1066, %v990, 0.0
      %v1075 = vadd.f32 %v1073, %v1074
      %v1076 = vsel %vm1066, %v993, 0.0
      %v1077 = vadd.f32 %v1075, %v1076
      %v1078 = vsel %vm1066, %v996, 0.0
      %v1079 = vadd.f32 %v1077, %v1078
      %v1080 = vsel %vm1066, %v999, 0.0
      %v1081 = vadd.f32 %v1079, %v1080
      %v1082 = vsel %vm1066, %v1002, 0.0
      %v1083 = vadd.f32 %v1081, %v1082
      %v1084 = vsel %vm1066, %v1005, 0.0
      %v1085 = vadd.f32 %v1083, %v1084
      %v1086 = vsel %vm1066, %v1008, 0.0
      %v1087 = vadd.f32 %v1085, %v1086
      %v1088 = vsel %vm1066, %v1011, 0.0
      %v1089 = vadd.f32 %v1087, %v1088
      %v1090 = vsel %vm1066, %v1014, 0.0
      %v1091 = vadd.f32 %v1089, %v1090
      %v1092 = vsel %vm1066, %v1017, 0.0
      %v1093 = vadd.f32 %v1091, %v1092
      %v1094 = vsel %vm1066, %v1020, 0.0
      %v1095 = vadd.f32 %v1093, %v1094
      %v1096 = vsel %vm1066, %v1023, 0.0
      %v1097 = vadd.f32 %v1095, %v1096
      %v1098 = vrot.slane %v1097, 4
      %v1099 = vadd.f32 %v1097, %v1098
      %v1100 = vrot.slane %v1099, 2
      %v1101 = vadd.f32 %v1099, %v1100
      %v1102 = vrot.slane %v1101, 1
      %v1103 = vadd.f32 %v1101, %v1102
      %1105 = vset.pattern.permute.xlu0 0
      %1106 = vperm.xlu0 %1105, %v303
      %v1107 = vpop.permute.xlu0 %1106
      %v1109 = vlaneseq
      %v1110 = vshrl.u32 %v1109, 7
      %v1111 = vsub.s32 0, %v1110
      %v1112 = vrot.slane %v1107, %v1111
      %v1113 = vadd.f32 %v1044, %v1112
      %v1114 = vadd.f32 %v1065, %v1112
      %v1115 = vadd.f32 %v1103, %v1112
      %v1116 = vld [vmem:[%s1] sm:$0x7]
      %v1118 = vlaneseq
      %v1119 = vshrl.u32 %v1118, 7
      %v1120 = vsub.s32 0, %v1119
      %v1121 = vrot.slane %v1116, %v1120
      %v1122 = vlaneseq
      %v1123 = vshrl.u32 %v1122, 7
      %v1124 = vsub.s32 1, %v1123
      %v1125 = vrot.slane %v1116, %v1124
      %v1126 = vlaneseq
      %v1127 = vshrl.u32 %v1126, 7
      %v1128 = vsub.s32 2, %v1127
      %v1129 = vrot.slane %v1116, %v1128
      %v1133 = vmul.f32 %v1113, %v1121
      %v1134 = vmul.f32 %v1114, %v1125
      %v1135 = vmul.f32 %v1115, %v1129
      %v1139 = vcombine.low %v1133, %v1134
      %v1141 = vunpack.c.l.s4 1966171168
      %v1142 = vunpack.c.0.s8 %v1141
      %v1143 = vlaneseq
      %v1144 = vshrl.u32 %v1143, 7
      %v1145 = vsub.s32 %v1142, %v1144
      %v1146 = vrot.slane %v1139, %v1145
      %v1148 = vunpack.c.l.s4 1966171168
      %v1149 = vunpack.c.0.s8 %v1148
      %v1150 = vlaneseq
      %v1151 = vshrl.u32 %v1150, 7
      %v1152 = vsub.s32 %v1149, %v1151
      %v1153 = vrot.slane %v1135, %v1152
      %v1154 = vcombine.low %v1146, %v1153
      %v1156 = vunpack.c.l.s4 1966171168
      %v1157 = vunpack.c.0.s8 %v1156
      %v1158 = vlaneseq
      %v1159 = vshrl.u32 %v1158, 7
      %v1160 = vsub.s32 %v1157, %v1159
      %v1161 = vrot.slane %v1154, %v1160
      %1162 = vrot.lane.b32.xlu0 %v1161, 19
      %v1163 = vpop.permute.xlu0 %1162
      %v1164 = vrot.slane %v1163, 7
      %vm1165 = vcmask 154624
      %v1166 = vsel %vm1165, %v1164, %v1163
      %vm1168 = vcmp.ge.s32.totalorder %v249, 19
      %vm1169 = vcmp.lt.s32.totalorder %v249, 307
      %vm1170 = vmand %vm1168, %vm1169
      %1171 = vst.msk [vmem:[#allocation3] sm:$0x7] %vm1170, %v1166
      %v1172 = vld [vmem:[#allocation3] sm:$0x7]
      %1173 = vst.msk [vmem:[#allocation4] ss:$8 sm:$0x7] %vm306, %v1172
      %1174 = vst.msk [vmem:[#allocation4] ss:$8 sm:$0x0] %vm306, %v1172
      %v1175 = vld [vmem:[#allocation3] sm:$0x7]
      %1177 = vrot.lane.b32.xlu0 %v1175, 127
      %v1178 = vpop.permute.xlu0 %1177
      %v1179 = vrot.slane %v1178, 1
      %v1180 = vsel %vm314, %v1178, %v1179
      %1182 = vst.msk [vmem:[%s317] ss:$8 sm:$0x7] %vm306, %v1180
      %1183 = vst.msk [vmem:[%s317] ss:$8 sm:$0x0] %vm306, %v1180
      %v1184 = vld [vmem:[#allocation3] sm:$0x7]
      %1186 = vrot.lane.b32.xlu0 %v1184, 126
      %v1187 = vpop.permute.xlu0 %1186
      %v1188 = vrot.slane %v1187, 1
      %v1189 = vsel %vm325, %v1187, %v1188
      %1191 = vst.msk [vmem:[%s328] ss:$8 sm:$0x7] %vm306, %v1189
      %1192 = vst.msk [vmem:[%s328] ss:$8 sm:$0x0] %vm306, %v1189
      %v1193 = vld [vmem:[#allocation3] sm:$0x7]
      %1195 = vrot.lane.b32.xlu0 %v1193, 110
      %v1196 = vpop.permute.xlu0 %1195
      %v1197 = vrot.slane %v1196, 1
      %v1198 = vsel %vm336, %v1196, %v1197
      %1200 = vst.msk [vmem:[%s339] ss:$8 sm:$0x7] %vm306, %v1198
      %1201 = vst.msk [vmem:[%s339] ss:$8 sm:$0x0] %vm306, %v1198
      %v1202 = vld [vmem:[#allocation3] sm:$0x7]
      %1204 = vrot.lane.b32.xlu0 %v1202, 109
      %v1205 = vpop.permute.xlu0 %1204
      %v1206 = vrot.slane %v1205, 1
      %v1207 = vsel %vm347, %v1205, %v1206
      %1209 = vst.msk [vmem:[%s350] ss:$8 sm:$0x7] %vm306, %v1207
      %1210 = vst.msk [vmem:[%s350] ss:$8 sm:$0x0] %vm306, %v1207
      %v1211 = vld [vmem:[#allocation3] sm:$0x7]
      %1213 = vrot.lane.b32.xlu0 %v1211, 108
      %v1214 = vpop.permute.xlu0 %1213
      %v1215 = vrot.slane %v1214, 1
      %v1216 = vsel %vm358, %v1214, %v1215
      %1218 = vst.msk [vmem:[%s361] ss:$8 sm:$0x7] %vm306, %v1216
      %1219 = vst.msk [vmem:[%s361] ss:$8 sm:$0x0] %vm306, %v1216
      %v1220 = vld [vmem:[#allocation3] sm:$0x7]
      %1222 = vrot.lane.b32.xlu0 %v1220, 92
      %v1223 = vpop.permute.xlu0 %1222
      %v1224 = vrot.slane %v1223, 1
      %v1225 = vsel %vm369, %v1223, %v1224
      %1227 = vst.msk [vmem:[%s372] ss:$8 sm:$0x7] %vm306, %v1225
      %1228 = vst.msk [vmem:[%s372] ss:$8 sm:$0x0] %vm306, %v1225
      %v1229 = vld [vmem:[#allocation3] sm:$0x7]
      %1231 = vrot.lane.b32.xlu0 %v1229, 91
      %v1232 = vpop.permute.xlu0 %1231
      %v1233 = vrot.slane %v1232, 1
      %v1234 = vsel %vm380, %v1232, %v1233
      %1236 = vst.msk [vmem:[%s383] ss:$8 sm:$0x7] %vm306, %v1234
      %1237 = vst.msk [vmem:[%s383] ss:$8 sm:$0x0] %vm306, %v1234
      %v1238 = vld [vmem:[#allocation3] sm:$0x7]
      %1240 = vrot.lane.b32.xlu0 %v1238, 90
      %v1241 = vpop.permute.xlu0 %1240
      %v1242 = vrot.slane %v1241, 1
      %v1243 = vsel %vm391, %v1241, %v1242
      %1245 = vst.msk [vmem:[%s394] ss:$8 sm:$0x7] %vm306, %v1243
      %1246 = vst.msk [vmem:[%s394] ss:$8 sm:$0x0] %vm306, %v1243
      %v1247 = vld [vmem:[#allocation4] sm:$0xff]
      %v1248 = vld [vmem:[#allocation4 + $0x8] sm:$0xff]
      %v1249 = vld [vmem:[#allocation4 + $0x10] sm:$0xff]
      %v1250 = vld [vmem:[#allocation4 + $0x18] sm:$0x1]
      %v1251 = vld [vmem:[#allocation4 + $0x20] sm:$0x1]
      %v1252 = vld [vmem:[#allocation4 + $0x28] sm:$0x1]
      %v1254 = vsel %vm532, %v1250, 0
      %v1257 = vsel %vm532, %v1251, 0
      %v1260 = vsel %vm532, %v1252, 0
      %1262 = vmatprep.subr.mxu0 0.0
      %1263 = vmatpush1.msra.mxu0 0.0
      %1264 = vmatprep.subr.mxu0 0.0
      %1265 = vmatpush1.msra.mxu0 0.0
      %1266 = vmatprep.subr.mxu0 0.0
      %1267 = vmatpush1.msra.mxu0 0.0
      %1268 = vmatprep.subr.mxu0 0.0
      %1269 = vmatpush1.msra.mxu0 0.0
      %1270 = vmatprep.subr.mxu0 0.0
      %1271 = vmatpush1.msra.mxu0 0.0
      %1272 = vmatprep.subr.mxu0 0.0
      %1273 = vmatpush1.msra.mxu0 0.0
      %1274 = vmatprep.subr.mxu0 0.0
      %1275 = vmatpush1.msra.mxu0 0.0
      %1276 = vmatprep.subr.mxu0 0.0
      %1277 = vmatpush1.msra.mxu0 0.0
      %1278 = vmatprep.subr.mxu0 0.0
      %1279 = vmatpush1.msra.mxu0 0.0
      %1280 = vmatprep.subr.mxu0 0.0
      %1281 = vmatpush1.msra.mxu0 0.0
      %1282 = vmatprep.subr.mxu0 0.0
      %1283 = vmatpush1.msra.mxu0 0.0
      %1284 = vmatprep.subr.mxu0 0.0
      %1285 = vmatpush1.msra.mxu0 0.0
      %1286 = vmatprep.subr.mxu0 0.0
      %1287 = vmatpush1.msra.mxu0 0.0
      %1288 = vmatprep.subr.mxu0 0.0
      %1289 = vmatpush1.msra.mxu0 0.0
      %1290 = vmatprep.subr.mxu0 %v1257
      %1291 = vmatpush1.msra.mxu0 %v1254
      %1292 = vmatprep.subr.mxu0 %v1248
      %1293 = vmatpush1.msra.mxu0 %v1247
      %1294 = vmatprep.subr.mxu0 0.0
      %1295 = vmatpush2.msra.mxu0 0.0
      %1296 = vmatprep.subr.mxu0 0.0
      %1297 = vmatpush2.msra.mxu0 0.0
      %1298 = vmatprep.subr.mxu0 0.0
      %1299 = vmatpush2.msra.mxu0 0.0
      %1300 = vmatprep.subr.mxu0 0.0
      %1301 = vmatpush2.msra.mxu0 0.0
      %1302 = vmatprep.subr.mxu0 0.0
      %1303 = vmatpush2.msra.mxu0 0.0
      %1304 = vmatprep.subr.mxu0 0.0
      %1305 = vmatpush2.msra.mxu0 0.0
      %1306 = vmatprep.subr.mxu0 0.0
      %1307 = vmatpush2.msra.mxu0 0.0
      %1308 = vmatprep.subr.mxu0 0.0
      %1309 = vmatpush2.msra.mxu0 0.0
      %1310 = vmatprep.subr.mxu0 0.0
      %1311 = vmatpush2.msra.mxu0 0.0
      %1312 = vmatprep.subr.mxu0 0.0
      %1313 = vmatpush2.msra.mxu0 0.0
      %1314 = vmatprep.subr.mxu0 0.0
      %1315 = vmatpush2.msra.mxu0 0.0
      %1316 = vmatprep.subr.mxu0 0.0
      %1317 = vmatpush2.msra.mxu0 0.0
      %1318 = vmatprep.subr.mxu0 0.0
      %1319 = vmatpush2.msra.mxu0 0.0
      %1320 = vmatprep.subr.mxu0 0.0
      %1321 = vmatpush2.msra.mxu0 0.0
      %1322 = vmatprep.subr.mxu0 0.0
      %1323 = vmatpush2.msra.mxu0 0.0
      %1324 = vmatprep.subr.mxu0 0.0
      %1325 = vmatpush2.msra.mxu0 0.0
      %1326 = vmatprep.mubr.f32.mxu0 0.0
      %1327 = vmatmul.mubr.f32.gmra.mxu0 %v485
      %v1328 = vpop.f32.mrf.mxu0
      %v1329 = vadd.f32 %v406, %v1328
      %v1330 = vpop.f32.mrf.mxu0
      %v1331 = vadd.f32 %v406, %v1330
      %1332 = vmatprep.mubr.f32.mxu0 0.0
      %1333 = vmatmul.mubr.f32.gmra.mxu0 %v488
      %v1334 = vpop.f32.mrf.mxu0
      %v1335 = vadd.f32 %v411, %v1334
      %v1336 = vpop.f32.mrf.mxu0
      %v1337 = vadd.f32 %v411, %v1336
      %1338 = vmatprep.mubr.f32.mxu0 0.0
      %1339 = vmatmul.mubr.f32.gmra.mxu0 %v491
      %v1340 = vpop.f32.mrf.mxu0
      %v1341 = vadd.f32 %v416, %v1340
      %v1342 = vpop.f32.mrf.mxu0
      %v1343 = vadd.f32 %v416, %v1342
      %1344 = vmatprep.mubr.f32.mxu0 0.0
      %1345 = vmatmul.mubr.f32.gmra.mxu0 %v494
      %v1346 = vpop.f32.mrf.mxu0
      %v1347 = vadd.f32 %v421, %v1346
      %v1348 = vpop.f32.mrf.mxu0
      %v1349 = vadd.f32 %v421, %v1348
      %1350 = vmatprep.mubr.f32.mxu0 0.0
      %1351 = vmatmul.mubr.f32.gmra.mxu0 %v497
      %v1352 = vpop.f32.mrf.mxu0
      %v1353 = vadd.f32 %v426, %v1352
      %v1354 = vpop.f32.mrf.mxu0
      %v1355 = vadd.f32 %v426, %v1354
      %1356 = vmatprep.mubr.f32.mxu0 0.0
      %1357 = vmatmul.mubr.f32.gmra.mxu0 %v500
      %v1358 = vpop.f32.mrf.mxu0
      %v1359 = vadd.f32 %v431, %v1358
      %v1360 = vpop.f32.mrf.mxu0
      %v1361 = vadd.f32 %v431, %v1360
      %1362 = vmatprep.mubr.f32.mxu0 0.0
      %1363 = vmatmul.mubr.f32.gmra.mxu0 %v503
      %v1364 = vpop.f32.mrf.mxu0
      %v1365 = vadd.f32 %v436, %v1364
      %v1366 = vpop.f32.mrf.mxu0
      %v1367 = vadd.f32 %v436, %v1366
      %1368 = vmatprep.mubr.f32.mxu0 0.0
      %1369 = vmatmul.mubr.f32.gmra.mxu0 %v506
      %v1370 = vpop.f32.mrf.mxu0
      %v1371 = vadd.f32 %v441, %v1370
      %v1372 = vpop.f32.mrf.mxu0
      %v1373 = vadd.f32 %v441, %v1372
      %1374 = vmatprep.mubr.f32.mxu0 0.0
      %1375 = vmatmul.mubr.f32.gmra.mxu0 %v509
      %v1376 = vpop.f32.mrf.mxu0
      %v1377 = vadd.f32 %v446, %v1376
      %v1378 = vpop.f32.mrf.mxu0
      %v1379 = vadd.f32 %v446, %v1378
      %1380 = vmatprep.mubr.f32.mxu0 0.0
      %1381 = vmatmul.mubr.f32.gmra.mxu0 %v512
      %v1382 = vpop.f32.mrf.mxu0
      %v1383 = vadd.f32 %v451, %v1382
      %v1384 = vpop.f32.mrf.mxu0
      %v1385 = vadd.f32 %v451, %v1384
      %1386 = vmatprep.mubr.f32.mxu0 0.0
      %1387 = vmatmul.mubr.f32.gmra.mxu0 %v515
      %v1388 = vpop.f32.mrf.mxu0
      %v1389 = vadd.f32 %v456, %v1388
      %v1390 = vpop.f32.mrf.mxu0
      %v1391 = vadd.f32 %v456, %v1390
      %1392 = vmatprep.mubr.f32.mxu0 0.0
      %1393 = vmatmul.mubr.f32.gmra.mxu0 %v518
      %v1394 = vpop.f32.mrf.mxu0
      %v1395 = vadd.f32 %v461, %v1394
      %v1396 = vpop.f32.mrf.mxu0
      %v1397 = vadd.f32 %v461, %v1396
      %1398 = vmatprep.mubr.f32.mxu0 0.0
      %1399 = vmatmul.mubr.f32.gmra.mxu0 %v521
      %v1400 = vpop.f32.mrf.mxu0
      %v1401 = vadd.f32 %v466, %v1400
      %v1402 = vpop.f32.mrf.mxu0
      %v1403 = vadd.f32 %v466, %v1402
      %1404 = vmatprep.mubr.f32.mxu0 0.0
      %1405 = vmatmul.mubr.f32.gmra.mxu0 %v524
      %v1406 = vpop.f32.mrf.mxu0
      %v1407 = vadd.f32 %v471, %v1406
      %v1408 = vpop.f32.mrf.mxu0
      %v1409 = vadd.f32 %v471, %v1408
      %1410 = vmatprep.mubr.f32.mxu0 0.0
      %1411 = vmatmul.mubr.f32.gmra.mxu0 %v527
      %v1412 = vpop.f32.mrf.mxu0
      %v1413 = vadd.f32 %v476, %v1412
      %v1414 = vpop.f32.mrf.mxu0
      %v1415 = vadd.f32 %v476, %v1414
      %1416 = vmatprep.mubr.f32.mxu0 0.0
      %1417 = vmatmul.mubr.f32.gmra.mxu0 %v530
      %v1418 = vpop.f32.mrf.mxu0
      %v1419 = vadd.f32 %v481, %v1418
      %v1420 = vpop.f32.mrf.mxu0
      %v1421 = vadd.f32 %v481, %v1420
      %1422 = vdwg.mxu0
      %1423 = vmatprep.subr.mxu0 0.0
      %1424 = vmatpush1.msra.mxu0 0.0
      %1425 = vmatprep.subr.mxu0 0.0
      %1426 = vmatpush1.msra.mxu0 0.0
      %1427 = vmatprep.subr.mxu0 0.0
      %1428 = vmatpush1.msra.mxu0 0.0
      %1429 = vmatprep.subr.mxu0 0.0
      %1430 = vmatpush1.msra.mxu0 0.0
      %1431 = vmatprep.subr.mxu0 0.0
      %1432 = vmatpush1.msra.mxu0 0.0
      %1433 = vmatprep.subr.mxu0 0.0
      %1434 = vmatpush1.msra.mxu0 0.0
      %1435 = vmatprep.subr.mxu0 0.0
      %1436 = vmatpush1.msra.mxu0 0.0
      %1437 = vmatprep.subr.mxu0 0.0
      %1438 = vmatpush1.msra.mxu0 0.0
      %1439 = vmatprep.subr.mxu0 0.0
      %1440 = vmatpush1.msra.mxu0 0.0
      %1441 = vmatprep.subr.mxu0 0.0
      %1442 = vmatpush1.msra.mxu0 0.0
      %1443 = vmatprep.subr.mxu0 0.0
      %1444 = vmatpush1.msra.mxu0 0.0
      %1445 = vmatprep.subr.mxu0 0.0
      %1446 = vmatpush1.msra.mxu0 0.0
      %1447 = vmatprep.subr.mxu0 0.0
      %1448 = vmatpush1.msra.mxu0 0.0
      %1449 = vmatprep.subr.mxu0 0.0
      %1450 = vmatpush1.msra.mxu0 0.0
      %1451 = vmatprep.subr.mxu0 0.0
      %1452 = vmatpush1.msra.mxu0 %v1260
      %1453 = vmatprep.subr.mxu0 0.0
      %1454 = vmatpush1.msra.mxu0 %v1249
      %1455 = vmatprep.subr.mxu0 0.0
      %1456 = vmatpush2.msra.mxu0 0.0
      %1457 = vmatprep.subr.mxu0 0.0
      %1458 = vmatpush2.msra.mxu0 0.0
      %1459 = vmatprep.subr.mxu0 0.0
      %1460 = vmatpush2.msra.mxu0 0.0
      %1461 = vmatprep.subr.mxu0 0.0
      %1462 = vmatpush2.msra.mxu0 0.0
      %1463 = vmatprep.subr.mxu0 0.0
      %1464 = vmatpush2.msra.mxu0 0.0
      %1465 = vmatprep.subr.mxu0 0.0
      %1466 = vmatpush2.msra.mxu0 0.0
      %1467 = vmatprep.subr.mxu0 0.0
      %1468 = vmatpush2.msra.mxu0 0.0
      %1469 = vmatprep.subr.mxu0 0.0
      %1470 = vmatpush2.msra.mxu0 0.0
      %1471 = vmatprep.subr.mxu0 0.0
      %1472 = vmatpush2.msra.mxu0 0.0
      %1473 = vmatprep.subr.mxu0 0.0
      %1474 = vmatpush2.msra.mxu0 0.0
      %1475 = vmatprep.subr.mxu0 0.0
      %1476 = vmatpush2.msra.mxu0 0.0
      %1477 = vmatprep.subr.mxu0 0.0
      %1478 = vmatpush2.msra.mxu0 0.0
      %1479 = vmatprep.subr.mxu0 0.0
      %1480 = vmatpush2.msra.mxu0 0.0
      %1481 = vmatprep.subr.mxu0 0.0
      %1482 = vmatpush2.msra.mxu0 0.0
      %1483 = vmatprep.subr.mxu0 0.0
      %1484 = vmatpush2.msra.mxu0 0.0
      %1485 = vmatprep.subr.mxu0 0.0
      %1486 = vmatpush2.msra.mxu0 0.0
      %1487 = vmatprep.mubr.f32.mxu0 0.0
      %1488 = vmatmul.mubr.f32.gmra.mxu0 %v485
      %v1489 = vpop.f32.mrf.mxu0
      %v1490 = vadd.f32 %v406, %v1489
      %v1491 = vpop.f32.mrf.mxu0
      %1492 = vmatprep.mubr.f32.mxu0 0.0
      %1493 = vmatmul.mubr.f32.gmra.mxu0 %v488
      %v1494 = vpop.f32.mrf.mxu0
      %v1495 = vadd.f32 %v411, %v1494
      %v1496 = vpop.f32.mrf.mxu0
      %1497 = vmatprep.mubr.f32.mxu0 0.0
      %1498 = vmatmul.mubr.f32.gmra.mxu0 %v491
      %v1499 = vpop.f32.mrf.mxu0
      %v1500 = vadd.f32 %v416, %v1499
      %v1501 = vpop.f32.mrf.mxu0
      %1502 = vmatprep.mubr.f32.mxu0 0.0
      %1503 = vmatmul.mubr.f32.gmra.mxu0 %v494
      %v1504 = vpop.f32.mrf.mxu0
      %v1505 = vadd.f32 %v421, %v1504
      %v1506 = vpop.f32.mrf.mxu0
      %1507 = vmatprep.mubr.f32.mxu0 0.0
      %1508 = vmatmul.mubr.f32.gmra.mxu0 %v497
      %v1509 = vpop.f32.mrf.mxu0
      %v1510 = vadd.f32 %v426, %v1509
      %v1511 = vpop.f32.mrf.mxu0
      %1512 = vmatprep.mubr.f32.mxu0 0.0
      %1513 = vmatmul.mubr.f32.gmra.mxu0 %v500
      %v1514 = vpop.f32.mrf.mxu0
      %v1515 = vadd.f32 %v431, %v1514
      %v1516 = vpop.f32.mrf.mxu0
      %1517 = vmatprep.mubr.f32.mxu0 0.0
      %1518 = vmatmul.mubr.f32.gmra.mxu0 %v503
      %v1519 = vpop.f32.mrf.mxu0
      %v1520 = vadd.f32 %v436, %v1519
      %v1521 = vpop.f32.mrf.mxu0
      %1522 = vmatprep.mubr.f32.mxu0 0.0
      %1523 = vmatmul.mubr.f32.gmra.mxu0 %v506
      %v1524 = vpop.f32.mrf.mxu0
      %v1525 = vadd.f32 %v441, %v1524
      %v1526 = vpop.f32.mrf.mxu0
      %1527 = vmatprep.mubr.f32.mxu0 0.0
      %1528 = vmatmul.mubr.f32.gmra.mxu0 %v509
      %v1529 = vpop.f32.mrf.mxu0
      %v1530 = vadd.f32 %v446, %v1529
      %v1531 = vpop.f32.mrf.mxu0
      %1532 = vmatprep.mubr.f32.mxu0 0.0
      %1533 = vmatmul.mubr.f32.gmra.mxu0 %v512
      %v1534 = vpop.f32.mrf.mxu0
      %v1535 = vadd.f32 %v451, %v1534
      %v1536 = vpop.f32.mrf.mxu0
      %1537 = vmatprep.mubr.f32.mxu0 0.0
      %1538 = vmatmul.mubr.f32.gmra.mxu0 %v515
      %v1539 = vpop.f32.mrf.mxu0
      %v1540 = vadd.f32 %v456, %v1539
      %v1541 = vpop.f32.mrf.mxu0
      %1542 = vmatprep.mubr.f32.mxu0 0.0
      %1543 = vmatmul.mubr.f32.gmra.mxu0 %v518
      %v1544 = vpop.f32.mrf.mxu0
      %v1545 = vadd.f32 %v461, %v1544
      %v1546 = vpop.f32.mrf.mxu0
      %1547 = vmatprep.mubr.f32.mxu0 0.0
      %1548 = vmatmul.mubr.f32.gmra.mxu0 %v521
      %v1549 = vpop.f32.mrf.mxu0
      %v1550 = vadd.f32 %v466, %v1549
      %v1551 = vpop.f32.mrf.mxu0
      %1552 = vmatprep.mubr.f32.mxu0 0.0
      %1553 = vmatmul.mubr.f32.gmra.mxu0 %v524
      %v1554 = vpop.f32.mrf.mxu0
      %v1555 = vadd.f32 %v471, %v1554
      %v1556 = vpop.f32.mrf.mxu0
      %1557 = vmatprep.mubr.f32.mxu0 0.0
      %1558 = vmatmul.mubr.f32.gmra.mxu0 %v527
      %v1559 = vpop.f32.mrf.mxu0
      %v1560 = vadd.f32 %v476, %v1559
      %v1561 = vpop.f32.mrf.mxu0
      %1562 = vmatprep.mubr.f32.mxu0 0.0
      %1563 = vmatmul.mubr.f32.gmra.mxu0 %v530
      %v1564 = vpop.f32.mrf.mxu0
      %v1565 = vadd.f32 %v481, %v1564
      %v1566 = vpop.f32.mrf.mxu0
      %1567 = vdwg.mxu0
      %v1568 = vmax.f32 %v1329, 0.0
      %v1569 = vmax.f32 %v1331, 0.0
      %v1570 = vmax.f32 %v1490, 0.0
      %v1571 = vmax.f32 %v1335, 0.0
      %v1572 = vmax.f32 %v1337, 0.0
      %v1573 = vmax.f32 %v1495, 0.0
      %v1574 = vmax.f32 %v1341, 0.0
      %v1575 = vmax.f32 %v1343, 0.0
      %v1576 = vmax.f32 %v1500, 0.0
      %v1577 = vmax.f32 %v1347, 0.0
      %v1578 = vmax.f32 %v1349, 0.0
      %v1579 = vmax.f32 %v1505, 0.0
      %v1580 = vmax.f32 %v1353, 0.0
      %v1581 = vmax.f32 %v1355, 0.0
      %v1582 = vmax.f32 %v1510, 0.0
      %v1583 = vmax.f32 %v1359, 0.0
      %v1584 = vmax.f32 %v1361, 0.0
      %v1585 = vmax.f32 %v1515, 0.0
      %v1586 = vmax.f32 %v1365, 0.0
      %v1587 = vmax.f32 %v1367, 0.0
      %v1588 = vmax.f32 %v1520, 0.0
      %v1589 = vmax.f32 %v1371, 0.0
      %v1590 = vmax.f32 %v1373, 0.0
      %v1591 = vmax.f32 %v1525, 0.0
      %v1592 = vmax.f32 %v1377, 0.0
      %v1593 = vmax.f32 %v1379, 0.0
      %v1594 = vmax.f32 %v1530, 0.0
      %v1595 = vmax.f32 %v1383, 0.0
      %v1596 = vmax.f32 %v1385, 0.0
      %v1597 = vmax.f32 %v1535, 0.0
      %v1598 = vmax.f32 %v1389, 0.0
      %v1599 = vmax.f32 %v1391, 0.0
      %v1600 = vmax.f32 %v1540, 0.0
      %v1601 = vmax.f32 %v1395, 0.0
      %v1602 = vmax.f32 %v1397, 0.0
      %v1603 = vmax.f32 %v1545, 0.0
      %v1604 = vmax.f32 %v1401, 0.0
      %v1605 = vmax.f32 %v1403, 0.0
      %v1606 = vmax.f32 %v1550, 0.0
      %v1607 = vmax.f32 %v1407, 0.0
      %v1608 = vmax.f32 %v1409, 0.0
      %v1609 = vmax.f32 %v1555, 0.0
      %v1610 = vmax.f32 %v1413, 0.0
      %v1611 = vmax.f32 %v1415, 0.0
      %v1612 = vmax.f32 %v1560, 0.0
      %v1613 = vmax.f32 %v1419, 0.0
      %v1614 = vmax.f32 %v1421, 0.0
      %v1615 = vmax.f32 %v1565, 0.0
      %v1616 = vmul.f32 %v1568, %v899
      %v1617 = vmul.f32 %v1569, %v899
      %v1618 = vmul.f32 %v1570, %v899
      %v1619 = vmul.f32 %v1571, %v904
      %v1620 = vmul.f32 %v1572, %v904
      %v1621 = vmul.f32 %v1573, %v904
      %v1622 = vmul.f32 %v1574, %v909
      %v1623 = vmul.f32 %v1575, %v909
      %v1624 = vmul.f32 %v1576, %v909
      %v1625 = vmul.f32 %v1577, %v914
      %v1626 = vmul.f32 %v1578, %v914
      %v1627 = vmul.f32 %v1579, %v914
      %v1628 = vmul.f32 %v1580, %v919
      %v1629 = vmul.f32 %v1581, %v919
      %v1630 = vmul.f32 %v1582, %v919
      %v1631 = vmul.f32 %v1583, %v924
      %v1632 = vmul.f32 %v1584, %v924
      %v1633 = vmul.f32 %v1585, %v924
      %v1634 = vmul.f32 %v1586, %v929
      %v1635 = vmul.f32 %v1587, %v929
      %v1636 = vmul.f32 %v1588, %v929
      %v1637 = vmul.f32 %v1589, %v934
      %v1638 = vmul.f32 %v1590, %v934
      %v1639 = vmul.f32 %v1591, %v934
      %v1640 = vmul.f32 %v1592, %v939
      %v1641 = vmul.f32 %v1593, %v939
      %v1642 = vmul.f32 %v1594, %v939
      %v1643 = vmul.f32 %v1595, %v944
      %v1644 = vmul.f32 %v1596, %v944
      %v1645 = vmul.f32 %v1597, %v944
      %v1646 = vmul.f32 %v1598, %v949
      %v1647 = vmul.f32 %v1599, %v949
      %v1648 = vmul.f32 %v1600, %v949
      %v1649 = vmul.f32 %v1601, %v954
      %v1650 = vmul.f32 %v1602, %v954
      %v1651 = vmul.f32 %v1603, %v954
      %v1652 = vmul.f32 %v1604, %v959
      %v1653 = vmul.f32 %v1605, %v959
      %v1654 = vmul.f32 %v1606, %v959
      %v1655 = vmul.f32 %v1607, %v964
      %v1656 = vmul.f32 %v1608, %v964
      %v1657 = vmul.f32 %v1609, %v964
      %v1658 = vmul.f32 %v1610, %v969
      %v1659 = vmul.f32 %v1611, %v969
      %v1660 = vmul.f32 %v1612, %v969
      %v1661 = vmul.f32 %v1613, %v974
      %v1662 = vmul.f32 %v1614, %v974
      %v1663 = vmul.f32 %v1615, %v974
      %v1664 = vadd.f32 %v1616, %v1619
      %v1665 = vadd.f32 %v1664, %v1622
      %v1666 = vadd.f32 %v1665, %v1625
      %v1667 = vadd.f32 %v1666, %v1628
      %v1668 = vadd.f32 %v1667, %v1631
      %v1669 = vadd.f32 %v1668, %v1634
      %v1670 = vadd.f32 %v1669, %v1637
      %v1671 = vadd.f32 %v1670, %v1640
      %v1672 = vadd.f32 %v1671, %v1643
      %v1673 = vadd.f32 %v1672, %v1646
      %v1674 = vadd.f32 %v1673, %v1649
      %v1675 = vadd.f32 %v1674, %v1652
      %v1676 = vadd.f32 %v1675, %v1655
      %v1677 = vadd.f32 %v1676, %v1658
      %v1678 = vadd.f32 %v1677, %v1661
      %v1679 = vrot.slane %v1678, 4
      %v1680 = vadd.f32 %v1678, %v1679
      %v1681 = vrot.slane %v1680, 2
      %v1682 = vadd.f32 %v1680, %v1681
      %v1683 = vrot.slane %v1682, 1
      %v1684 = vadd.f32 %v1682, %v1683
      %v1685 = vadd.f32 %v1617, %v1620
      %v1686 = vadd.f32 %v1685, %v1623
      %v1687 = vadd.f32 %v1686, %v1626
      %v1688 = vadd.f32 %v1687, %v1629
      %v1689 = vadd.f32 %v1688, %v1632
      %v1690 = vadd.f32 %v1689, %v1635
      %v1691 = vadd.f32 %v1690, %v1638
      %v1692 = vadd.f32 %v1691, %v1641
      %v1693 = vadd.f32 %v1692, %v1644
      %v1694 = vadd.f32 %v1693, %v1647
      %v1695 = vadd.f32 %v1694, %v1650
      %v1696 = vadd.f32 %v1695, %v1653
      %v1697 = vadd.f32 %v1696, %v1656
      %v1698 = vadd.f32 %v1697, %v1659
      %v1699 = vadd.f32 %v1698, %v1662
      %v1700 = vrot.slane %v1699, 4
      %v1701 = vadd.f32 %v1699, %v1700
      %v1702 = vrot.slane %v1701, 2
      %v1703 = vadd.f32 %v1701, %v1702
      %v1704 = vrot.slane %v1703, 1
      %v1705 = vadd.f32 %v1703, %v1704
      %v1706 = vsel %vm1066, %v1618, 0.0
      %v1707 = vsel %vm1066, %v1621, 0.0
      %v1708 = vadd.f32 %v1706, %v1707
      %v1709 = vsel %vm1066, %v1624, 0.0
      %v1710 = vadd.f32 %v1708, %v1709
      %v1711 = vsel %vm1066, %v1627, 0.0
      %v1712 = vadd.f32 %v1710, %v1711
      %v1713 = vsel %vm1066, %v1630, 0.0
      %v1714 = vadd.f32 %v1712, %v1713
      %v1715 = vsel %vm1066, %v1633, 0.0
      %v1716 = vadd.f32 %v1714, %v1715
      %v1717 = vsel %vm1066, %v1636, 0.0
      %v1718 = vadd.f32 %v1716, %v1717
      %v1719 = vsel %vm1066, %v1639, 0.0
      %v1720 = vadd.f32 %v1718, %v1719
      %v1721 = vsel %vm1066, %v1642, 0.0
      %v1722 = vadd.f32 %v1720, %v1721
      %v1723 = vsel %vm1066, %v1645, 0.0
      %v1724 = vadd.f32 %v1722, %v1723
      %v1725 = vsel %vm1066, %v1648, 0.0
      %v1726 = vadd.f32 %v1724, %v1725
      %v1727 = vsel %vm1066, %v1651, 0.0
      %v1728 = vadd.f32 %v1726, %v1727
      %v1729 = vsel %vm1066, %v1654, 0.0
      %v1730 = vadd.f32 %v1728, %v1729
      %v1731 = vsel %vm1066, %v1657, 0.0
      %v1732 = vadd.f32 %v1730, %v1731
      %v1733 = vsel %vm1066, %v1660, 0.0
      %v1734 = vadd.f32 %v1732, %v1733
      %v1735 = vsel %vm1066, %v1663, 0.0
      %v1736 = vadd.f32 %v1734, %v1735
      %v1737 = vrot.slane %v1736, 4
      %v1738 = vadd.f32 %v1736, %v1737
      %v1739 = vrot.slane %v1738, 2
      %v1740 = vadd.f32 %v1738, %v1739
      %v1741 = vrot.slane %v1740, 1
      %v1742 = vadd.f32 %v1740, %v1741
      %v1743 = vadd.f32 %v1684, %v1112
      %v1744 = vadd.f32 %v1705, %v1112
      %v1745 = vadd.f32 %v1742, %v1112
      %v1746 = vld [vmem:[%s1] sm:$0x7]
      %v1748 = vlaneseq
      %v1749 = vshrl.u32 %v1748, 7
      %v1750 = vsub.s32 0, %v1749
      %v1751 = vrot.slane %v1746, %v1750
      %v1752 = vlaneseq
      %v1753 = vshrl.u32 %v1752, 7
      %v1754 = vsub.s32 1, %v1753
      %v1755 = vrot.slane %v1746, %v1754
      %v1756 = vlaneseq
      %v1757 = vshrl.u32 %v1756, 7
      %v1758 = vsub.s32 2, %v1757
      %v1759 = vrot.slane %v1746, %v1758
      %v1763 = vmul.f32 %v1743, %v1751
      %v1764 = vmul.f32 %v1744, %v1755
      %v1765 = vmul.f32 %v1745, %v1759
      %v1769 = vcombine.low %v1763, %v1764
      %v1771 = vunpack.c.l.s4 1966171168
      %v1772 = vunpack.c.0.s8 %v1771
      %v1773 = vlaneseq
      %v1774 = vshrl.u32 %v1773, 7
      %v1775 = vsub.s32 %v1772, %v1774
      %v1776 = vrot.slane %v1769, %v1775
      %v1778 = vunpack.c.l.s4 1966171168
      %v1779 = vunpack.c.0.s8 %v1778
      %v1780 = vlaneseq
      %v1781 = vshrl.u32 %v1780, 7
      %v1782 = vsub.s32 %v1779, %v1781
      %v1783 = vrot.slane %v1765, %v1782
      %v1784 = vcombine.low %v1776, %v1783
      %v1786 = vunpack.c.l.s4 1966171168
      %v1787 = vunpack.c.0.s8 %v1786
      %v1788 = vlaneseq
      %v1789 = vshrl.u32 %v1788, 7
      %v1790 = vsub.s32 %v1787, %v1789
      %v1791 = vrot.slane %v1784, %v1790
      %1792 = vrot.lane.b32.xlu0 %v1791, 19
      %v1793 = vpop.permute.xlu0 %1792
      %v1794 = vrot.slane %v1793, 7
      %v1795 = vsel %vm1165, %v1794, %v1793
      %1797 = vst.msk [vmem:[#allocation2] sm:$0x7] %vm1170, %v1795
      %v1798 = vld [vmem:[#allocation2] sm:$0x7]
      %1799 = vst.msk [vmem:[#allocation4] ss:$8 sm:$0x7] %vm306, %v1798
      %1800 = vst.msk [vmem:[#allocation4] ss:$8 sm:$0x0] %vm306, %v1798
      %v1801 = vld [vmem:[#allocation2] sm:$0x7]
      %1803 = vrot.lane.b32.xlu0 %v1801, 127
      %v1804 = vpop.permute.xlu0 %1803
      %v1805 = vrot.slane %v1804, 1
      %v1806 = vsel %vm314, %v1804, %v1805
      %1808 = vst.msk [vmem:[%s317] ss:$8 sm:$0x7] %vm306, %v1806
      %1809 = vst.msk [vmem:[%s317] ss:$8 sm:$0x0] %vm306, %v1806
      %v1810 = vld [vmem:[#allocation2] sm:$0x7]
      %1812 = vrot.lane.b32.xlu0 %v1810, 126
      %v1813 = vpop.permute.xlu0 %1812
      %v1814 = vrot.slane %v1813, 1
      %v1815 = vsel %vm325, %v1813, %v1814
      %1817 = vst.msk [vmem:[%s328] ss:$8 sm:$0x7] %vm306, %v1815
      %1818 = vst.msk [vmem:[%s328] ss:$8 sm:$0x0] %vm306, %v1815
      %v1819 = vld [vmem:[#allocation2] sm:$0x7]
      %1821 = vrot.lane.b32.xlu0 %v1819, 110
      %v1822 = vpop.permute.xlu0 %1821
      %v1823 = vrot.slane %v1822, 1
      %v1824 = vsel %vm336, %v1822, %v1823
      %1826 = vst.msk [vmem:[%s339] ss:$8 sm:$0x7] %vm306, %v1824
      %1827 = vst.msk [vmem:[%s339] ss:$8 sm:$0x0] %vm306, %v1824
      %v1828 = vld [vmem:[#allocation2] sm:$0x7]
      %1830 = vrot.lane.b32.xlu0 %v1828, 109
      %v1831 = vpop.permute.xlu0 %1830
      %v1832 = vrot.slane %v1831, 1
      %v1833 = vsel %vm347, %v1831, %v1832
      %1835 = vst.msk [vmem:[%s350] ss:$8 sm:$0x7] %vm306, %v1833
      %1836 = vst.msk [vmem:[%s350] ss:$8 sm:$0x0] %vm306, %v1833
      %v1837 = vld [vmem:[#allocation2] sm:$0x7]
      %1839 = vrot.lane.b32.xlu0 %v1837, 108
      %v1840 = vpop.permute.xlu0 %1839
      %v1841 = vrot.slane %v1840, 1
      %v1842 = vsel %vm358, %v1840, %v1841
      %1844 = vst.msk [vmem:[%s361] ss:$8 sm:$0x7] %vm306, %v1842
      %1845 = vst.msk [vmem:[%s361] ss:$8 sm:$0x0] %vm306, %v1842
      %v1846 = vld [vmem:[#allocation2] sm:$0x7]
      %1848 = vrot.lane.b32.xlu0 %v1846, 92
      %v1849 = vpop.permute.xlu0 %1848
      %v1850 = vrot.slane %v1849, 1
      %v1851 = vsel %vm369, %v1849, %v1850
      %1853 = vst.msk [vmem:[%s372] ss:$8 sm:$0x7] %vm306, %v1851
      %1854 = vst.msk [vmem:[%s372] ss:$8 sm:$0x0] %vm306, %v1851
      %v1855 = vld [vmem:[#allocation2] sm:$0x7]
      %1857 = vrot.lane.b32.xlu0 %v1855, 91
      %v1858 = vpop.permute.xlu0 %1857
      %v1859 = vrot.slane %v1858, 1
      %v1860 = vsel %vm380, %v1858, %v1859
      %1862 = vst.msk [vmem:[%s383] ss:$8 sm:$0x7] %vm306, %v1860
      %1863 = vst.msk [vmem:[%s383] ss:$8 sm:$0x0] %vm306, %v1860
      %v1864 = vld [vmem:[#allocation2] sm:$0x7]
      %1866 = vrot.lane.b32.xlu0 %v1864, 90
      %v1867 = vpop.permute.xlu0 %1866
      %v1868 = vrot.slane %v1867, 1
      %v1869 = vsel %vm391, %v1867, %v1868
      %1871 = vst.msk [vmem:[%s394] ss:$8 sm:$0x7] %vm306, %v1869
      %1872 = vst.msk [vmem:[%s394] ss:$8 sm:$0x0] %vm306, %v1869
      %v1873 = vld [vmem:[#allocation4] sm:$0xff]
      %v1874 = vld [vmem:[#allocation4 + $0x8] sm:$0xff]
      %v1875 = vld [vmem:[#allocation4 + $0x10] sm:$0xff]
      %v1876 = vld [vmem:[#allocation4 + $0x18] sm:$0x1]
      %v1877 = vld [vmem:[#allocation4 + $0x20] sm:$0x1]
      %v1878 = vld [vmem:[#allocation4 + $0x28] sm:$0x1]
      %v1880 = vsel %vm532, %v1876, 0
      %v1883 = vsel %vm532, %v1877, 0
      %v1886 = vsel %vm532, %v1878, 0
      %1888 = vmatprep.subr.mxu0 0.0
      %1889 = vmatpush1.msra.mxu0 0.0
      %1890 = vmatprep.subr.mxu0 0.0
      %1891 = vmatpush1.msra.mxu0 0.0
      %1892 = vmatprep.subr.mxu0 0.0
      %1893 = vmatpush1.msra.mxu0 0.0
      %1894 = vmatprep.subr.mxu0 0.0
      %1895 = vmatpush1.msra.mxu0 0.0
      %1896 = vmatprep.subr.mxu0 0.0
      %1897 = vmatpush1.msra.mxu0 0.0
      %1898 = vmatprep.subr.mxu0 0.0
      %1899 = vmatpush1.msra.mxu0 0.0
      %1900 = vmatprep.subr.mxu0 0.0
      %1901 = vmatpush1.msra.mxu0 0.0
      %1902 = vmatprep.subr.mxu0 0.0
      %1903 = vmatpush1.msra.mxu0 0.0
      %1904 = vmatprep.subr.mxu0 0.0
      %1905 = vmatpush1.msra.mxu0 0.0
      %1906 = vmatprep.subr.mxu0 0.0
      %1907 = vmatpush1.msra.mxu0 0.0
      %1908 = vmatprep.subr.mxu0 0.0
      %1909 = vmatpush1.msra.mxu0 0.0
      %1910 = vmatprep.subr.mxu0 0.0
      %1911 = vmatpush1.msra.mxu0 0.0
      %1912 = vmatprep.subr.mxu0 0.0
      %1913 = vmatpush1.msra.mxu0 0.0
      %1914 = vmatprep.subr.mxu0 0.0
      %1915 = vmatpush1.msra.mxu0 0.0
      %1916 = vmatprep.subr.mxu0 %v1883
      %1917 = vmatpush1.msra.mxu0 %v1880
      %1918 = vmatprep.subr.mxu0 %v1874
      %1919 = vmatpush1.msra.mxu0 %v1873
      %1920 = vmatprep.subr.mxu0 0.0
      %1921 = vmatpush2.msra.mxu0 0.0
      %1922 = vmatprep.subr.mxu0 0.0
      %1923 = vmatpush2.msra.mxu0 0.0
      %1924 = vmatprep.subr.mxu0 0.0
      %1925 = vmatpush2.msra.mxu0 0.0
      %1926 = vmatprep.subr.mxu0 0.0
      %1927 = vmatpush2.msra.mxu0 0.0
      %1928 = vmatprep.subr.mxu0 0.0
      %1929 = vmatpush2.msra.mxu0 0.0
      %1930 = vmatprep.subr.mxu0 0.0
      %1931 = vmatpush2.msra.mxu0 0.0
      %1932 = vmatprep.subr.mxu0 0.0
      %1933 = vmatpush2.msra.mxu0 0.0
      %1934 = vmatprep.subr.mxu0 0.0
      %1935 = vmatpush2.msra.mxu0 0.0
      %1936 = vmatprep.subr.mxu0 0.0
      %1937 = vmatpush2.msra.mxu0 0.0
      %1938 = vmatprep.subr.mxu0 0.0
      %1939 = vmatpush2.msra.mxu0 0.0
      %1940 = vmatprep.subr.mxu0 0.0
      %1941 = vmatpush2.msra.mxu0 0.0
      %1942 = vmatprep.subr.mxu0 0.0
      %1943 = vmatpush2.msra.mxu0 0.0
      %1944 = vmatprep.subr.mxu0 0.0
      %1945 = vmatpush2.msra.mxu0 0.0
      %1946 = vmatprep.subr.mxu0 0.0
      %1947 = vmatpush2.msra.mxu0 0.0
      %1948 = vmatprep.subr.mxu0 0.0
      %1949 = vmatpush2.msra.mxu0 0.0
      %1950 = vmatprep.subr.mxu0 0.0
      %1951 = vmatpush2.msra.mxu0 0.0
      %1952 = vmatprep.mubr.f32.mxu0 0.0
      %1953 = vmatmul.mubr.f32.gmra.mxu0 %v485
      %v1954 = vpop.f32.mrf.mxu0
      %v1955 = vadd.f32 %v406, %v1954
      %v1956 = vpop.f32.mrf.mxu0
      %v1957 = vadd.f32 %v406, %v1956
      %1958 = vmatprep.mubr.f32.mxu0 0.0
      %1959 = vmatmul.mubr.f32.gmra.mxu0 %v488
      %v1960 = vpop.f32.mrf.mxu0
      %v1961 = vadd.f32 %v411, %v1960
      %v1962 = vpop.f32.mrf.mxu0
      %v1963 = vadd.f32 %v411, %v1962
      %1964 = vmatprep.mubr.f32.mxu0 0.0
      %1965 = vmatmul.mubr.f32.gmra.mxu0 %v491
      %v1966 = vpop.f32.mrf.mxu0
      %v1967 = vadd.f32 %v416, %v1966
      %v1968 = vpop.f32.mrf.mxu0
      %v1969 = vadd.f32 %v416, %v1968
      %1970 = vmatprep.mubr.f32.mxu0 0.0
      %1971 = vmatmul.mubr.f32.gmra.mxu0 %v494
      %v1972 = vpop.f32.mrf.mxu0
      %v1973 = vadd.f32 %v421, %v1972
      %v1974 = vpop.f32.mrf.mxu0
      %v1975 = vadd.f32 %v421, %v1974
      %1976 = vmatprep.mubr.f32.mxu0 0.0
      %1977 = vmatmul.mubr.f32.gmra.mxu0 %v497
      %v1978 = vpop.f32.mrf.mxu0
      %v1979 = vadd.f32 %v426, %v1978
      %v1980 = vpop.f32.mrf.mxu0
      %v1981 = vadd.f32 %v426, %v1980
      %1982 = vmatprep.mubr.f32.mxu0 0.0
      %1983 = vmatmul.mubr.f32.gmra.mxu0 %v500
      %v1984 = vpop.f32.mrf.mxu0
      %v1985 = vadd.f32 %v431, %v1984
      %v1986 = vpop.f32.mrf.mxu0
      %v1987 = vadd.f32 %v431, %v1986
      %1988 = vmatprep.mubr.f32.mxu0 0.0
      %1989 = vmatmul.mubr.f32.gmra.mxu0 %v503
      %v1990 = vpop.f32.mrf.mxu0
      %v1991 = vadd.f32 %v436, %v1990
      %v1992 = vpop.f32.mrf.mxu0
      %v1993 = vadd.f32 %v436, %v1992
      %1994 = vmatprep.mubr.f32.mxu0 0.0
      %1995 = vmatmul.mubr.f32.gmra.mxu0 %v506
      %v1996 = vpop.f32.mrf.mxu0
      %v1997 = vadd.f32 %v441, %v1996
      %v1998 = vpop.f32.mrf.mxu0
      %v1999 = vadd.f32 %v441, %v1998
      %2000 = vmatprep.mubr.f32.mxu0 0.0
      %2001 = vmatmul.mubr.f32.gmra.mxu0 %v509
      %v2002 = vpop.f32.mrf.mxu0
      %v2003 = vadd.f32 %v446, %v2002
      %v2004 = vpop.f32.mrf.mxu0
      %v2005 = vadd.f32 %v446, %v2004
      %2006 = vmatprep.mubr.f32.mxu0 0.0
      %2007 = vmatmul.mubr.f32.gmra.mxu0 %v512
      %v2008 = vpop.f32.mrf.mxu0
      %v2009 = vadd.f32 %v451, %v2008
      %v2010 = vpop.f32.mrf.mxu0
      %v2011 = vadd.f32 %v451, %v2010
      %2012 = vmatprep.mubr.f32.mxu0 0.0
      %2013 = vmatmul.mubr.f32.gmra.mxu0 %v515
      %v2014 = vpop.f32.mrf.mxu0
      %v2015 = vadd.f32 %v456, %v2014
      %v2016 = vpop.f32.mrf.mxu0
      %v2017 = vadd.f32 %v456, %v2016
      %2018 = vmatprep.mubr.f32.mxu0 0.0
      %2019 = vmatmul.mubr.f32.gmra.mxu0 %v518
      %v2020 = vpop.f32.mrf.mxu0
      %v2021 = vadd.f32 %v461, %v2020
      %v2022 = vpop.f32.mrf.mxu0
      %v2023 = vadd.f32 %v461, %v2022
      %2024 = vmatprep.mubr.f32.mxu0 0.0
      %2025 = vmatmul.mubr.f32.gmra.mxu0 %v521
      %v2026 = vpop.f32.mrf.mxu0
      %v2027 = vadd.f32 %v466, %v2026
      %v2028 = vpop.f32.mrf.mxu0
      %v2029 = vadd.f32 %v466, %v2028
      %2030 = vmatprep.mubr.f32.mxu0 0.0
      %2031 = vmatmul.mubr.f32.gmra.mxu0 %v524
      %v2032 = vpop.f32.mrf.mxu0
      %v2033 = vadd.f32 %v471, %v2032
      %v2034 = vpop.f32.mrf.mxu0
      %v2035 = vadd.f32 %v471, %v2034
      %2036 = vmatprep.mubr.f32.mxu0 0.0
      %2037 = vmatmul.mubr.f32.gmra.mxu0 %v527
      %v2038 = vpop.f32.mrf.mxu0
      %v2039 = vadd.f32 %v476, %v2038
      %v2040 = vpop.f32.mrf.mxu0
      %v2041 = vadd.f32 %v476, %v2040
      %2042 = vmatprep.mubr.f32.mxu0 0.0
      %2043 = vmatmul.mubr.f32.gmra.mxu0 %v530
      %v2044 = vpop.f32.mrf.mxu0
      %v2045 = vadd.f32 %v481, %v2044
      %v2046 = vpop.f32.mrf.mxu0
      %v2047 = vadd.f32 %v481, %v2046
      %2048 = vdwg.mxu0
      %2049 = vmatprep.subr.mxu0 0.0
      %2050 = vmatpush1.msra.mxu0 0.0
      %2051 = vmatprep.subr.mxu0 0.0
      %2052 = vmatpush1.msra.mxu0 0.0
      %2053 = vmatprep.subr.mxu0 0.0
      %2054 = vmatpush1.msra.mxu0 0.0
      %2055 = vmatprep.subr.mxu0 0.0
      %2056 = vmatpush1.msra.mxu0 0.0
      %2057 = vmatprep.subr.mxu0 0.0
      %2058 = vmatpush1.msra.mxu0 0.0
      %2059 = vmatprep.subr.mxu0 0.0
      %2060 = vmatpush1.msra.mxu0 0.0
      %2061 = vmatprep.subr.mxu0 0.0
      %2062 = vmatpush1.msra.mxu0 0.0
      %2063 = vmatprep.subr.mxu0 0.0
      %2064 = vmatpush1.msra.mxu0 0.0
      %2065 = vmatprep.subr.mxu0 0.0
      %2066 = vmatpush1.msra.mxu0 0.0
      %2067 = vmatprep.subr.mxu0 0.0
      %2068 = vmatpush1.msra.mxu0 0.0
      %2069 = vmatprep.subr.mxu0 0.0
      %2070 = vmatpush1.msra.mxu0 0.0
      %2071 = vmatprep.subr.mxu0 0.0
      %2072 = vmatpush1.msra.mxu0 0.0
      %2073 = vmatprep.subr.mxu0 0.0
      %2074 = vmatpush1.msra.mxu0 0.0
      %2075 = vmatprep.subr.mxu0 0.0
      %2076 = vmatpush1.msra.mxu0 0.0
      %2077 = vmatprep.subr.mxu0 0.0
      %2078 = vmatpush1.msra.mxu0 %v1886
      %2079 = vmatprep.subr.mxu0 0.0
      %2080 = vmatpush1.msra.mxu0 %v1875
      %2081 = vmatprep.subr.mxu0 0.0
      %2082 = vmatpush2.msra.mxu0 0.0
      %2083 = vmatprep.subr.mxu0 0.0
      %2084 = vmatpush2.msra.mxu0 0.0
      %2085 = vmatprep.subr.mxu0 0.0
      %2086 = vmatpush2.msra.mxu0 0.0
      %2087 = vmatprep.subr.mxu0 0.0
      %2088 = vmatpush2.msra.mxu0 0.0
      %2089 = vmatprep.subr.mxu0 0.0
      %2090 = vmatpush2.msra.mxu0 0.0
      %2091 = vmatprep.subr.mxu0 0.0
      %2092 = vmatpush2.msra.mxu0 0.0
      %2093 = vmatprep.subr.mxu0 0.0
      %2094 = vmatpush2.msra.mxu0 0.0
      %2095 = vmatprep.subr.mxu0 0.0
      %2096 = vmatpush2.msra.mxu0 0.0
      %2097 = vmatprep.subr.mxu0 0.0
      %2098 = vmatpush2.msra.mxu0 0.0
      %2099 = vmatprep.subr.mxu0 0.0
      %2100 = vmatpush2.msra.mxu0 0.0
      %2101 = vmatprep.subr.mxu0 0.0
      %2102 = vmatpush2.msra.mxu0 0.0
      %2103 = vmatprep.subr.mxu0 0.0
      %2104 = vmatpush2.msra.mxu0 0.0
      %2105 = vmatprep.subr.mxu0 0.0
      %2106 = vmatpush2.msra.mxu0 0.0
      %2107 = vmatprep.subr.mxu0 0.0
      %2108 = vmatpush2.msra.mxu0 0.0
      %2109 = vmatprep.subr.mxu0 0.0
      %2110 = vmatpush2.msra.mxu0 0.0
      %2111 = vmatprep.subr.mxu0 0.0
      %2112 = vmatpush2.msra.mxu0 0.0
      %2113 = vmatprep.mubr.f32.mxu0 0.0
      %2114 = vmatmul.mubr.f32.gmra.mxu0 %v485
      %v2115 = vpop.f32.mrf.mxu0
      %v2116 = vadd.f32 %v406, %v2115
      %v2117 = vpop.f32.mrf.mxu0
      %2118 = vmatprep.mubr.f32.mxu0 0.0
      %2119 = vmatmul.mubr.f32.gmra.mxu0 %v488
      %v2120 = vpop.f32.mrf.mxu0
      %v2121 = vadd.f32 %v411, %v2120
      %v2122 = vpop.f32.mrf.mxu0
      %2123 = vmatprep.mubr.f32.mxu0 0.0
      %2124 = vmatmul.mubr.f32.gmra.mxu0 %v491
      %v2125 = vpop.f32.mrf.mxu0
      %v2126 = vadd.f32 %v416, %v2125
      %v2127 = vpop.f32.mrf.mxu0
      %2128 = vmatprep.mubr.f32.mxu0 0.0
      %2129 = vmatmul.mubr.f32.gmra.mxu0 %v494
      %v2130 = vpop.f32.mrf.mxu0
      %v2131 = vadd.f32 %v421, %v2130
      %v2132 = vpop.f32.mrf.mxu0
      %2133 = vmatprep.mubr.f32.mxu0 0.0
      %2134 = vmatmul.mubr.f32.gmra.mxu0 %v497
      %v2135 = vpop.f32.mrf.mxu0
      %v2136 = vadd.f32 %v426, %v2135
      %v2137 = vpop.f32.mrf.mxu0
      %2138 = vmatprep.mubr.f32.mxu0 0.0
      %2139 = vmatmul.mubr.f32.gmra.mxu0 %v500
      %v2140 = vpop.f32.mrf.mxu0
      %v2141 = vadd.f32 %v431, %v2140
      %v2142 = vpop.f32.mrf.mxu0
      %2143 = vmatprep.mubr.f32.mxu0 0.0
      %2144 = vmatmul.mubr.f32.gmra.mxu0 %v503
      %v2145 = vpop.f32.mrf.mxu0
      %v2146 = vadd.f32 %v436, %v2145
      %v2147 = vpop.f32.mrf.mxu0
      %2148 = vmatprep.mubr.f32.mxu0 0.0
      %2149 = vmatmul.mubr.f32.gmra.mxu0 %v506
      %v2150 = vpop.f32.mrf.mxu0
      %v2151 = vadd.f32 %v441, %v2150
      %v2152 = vpop.f32.mrf.mxu0
      %2153 = vmatprep.mubr.f32.mxu0 0.0
      %2154 = vmatmul.mubr.f32.gmra.mxu0 %v509
      %v2155 = vpop.f32.mrf.mxu0
      %v2156 = vadd.f32 %v446, %v2155
      %v2157 = vpop.f32.mrf.mxu0
      %2158 = vmatprep.mubr.f32.mxu0 0.0
      %2159 = vmatmul.mubr.f32.gmra.mxu0 %v512
      %v2160 = vpop.f32.mrf.mxu0
      %v2161 = vadd.f32 %v451, %v2160
      %v2162 = vpop.f32.mrf.mxu0
      %2163 = vmatprep.mubr.f32.mxu0 0.0
      %2164 = vmatmul.mubr.f32.gmra.mxu0 %v515
      %v2165 = vpop.f32.mrf.mxu0
      %v2166 = vadd.f32 %v456, %v2165
      %v2167 = vpop.f32.mrf.mxu0
      %2168 = vmatprep.mubr.f32.mxu0 0.0
      %2169 = vmatmul.mubr.f32.gmra.mxu0 %v518
      %v2170 = vpop.f32.mrf.mxu0
      %v2171 = vadd.f32 %v461, %v2170
      %v2172 = vpop.f32.mrf.mxu0
      %2173 = vmatprep.mubr.f32.mxu0 0.0
      %2174 = vmatmul.mubr.f32.gmra.mxu0 %v521
      %v2175 = vpop.f32.mrf.mxu0
      %v2176 = vadd.f32 %v466, %v2175
      %v2177 = vpop.f32.mrf.mxu0
      %2178 = vmatprep.mubr.f32.mxu0 0.0
      %2179 = vmatmul.mubr.f32.gmra.mxu0 %v524
      %v2180 = vpop.f32.mrf.mxu0
      %v2181 = vadd.f32 %v471, %v2180
      %v2182 = vpop.f32.mrf.mxu0
      %2183 = vmatprep.mubr.f32.mxu0 0.0
      %2184 = vmatmul.mubr.f32.gmra.mxu0 %v527
      %v2185 = vpop.f32.mrf.mxu0
      %v2186 = vadd.f32 %v476, %v2185
      %v2187 = vpop.f32.mrf.mxu0
      %2188 = vmatprep.mubr.f32.mxu0 0.0
      %2189 = vmatmul.mubr.f32.gmra.mxu0 %v530
      %v2190 = vpop.f32.mrf.mxu0
      %v2191 = vadd.f32 %v481, %v2190
      %v2192 = vpop.f32.mrf.mxu0
      %2193 = vdwg.mxu0
      %v2194 = vmax.f32 %v1955, 0.0
      %v2195 = vmax.f32 %v1957, 0.0
      %v2196 = vmax.f32 %v2116, 0.0
      %v2197 = vmax.f32 %v1961, 0.0
      %v2198 = vmax.f32 %v1963, 0.0
      %v2199 = vmax.f32 %v2121, 0.0
      %v2200 = vmax.f32 %v1967, 0.0
      %v2201 = vmax.f32 %v1969, 0.0
      %v2202 = vmax.f32 %v2126, 0.0
      %v2203 = vmax.f32 %v1973, 0.0
      %v2204 = vmax.f32 %v1975, 0.0
      %v2205 = vmax.f32 %v2131, 0.0
      %v2206 = vmax.f32 %v1979, 0.0
      %v2207 = vmax.f32 %v1981, 0.0
      %v2208 = vmax.f32 %v2136, 0.0
      %v2209 = vmax.f32 %v1985, 0.0
      %v2210 = vmax.f32 %v1987, 0.0
      %v2211 = vmax.f32 %v2141, 0.0
      %v2212 = vmax.f32 %v1991, 0.0
      %v2213 = vmax.f32 %v1993, 0.0
      %v2214 = vmax.f32 %v2146, 0.0
      %v2215 = vmax.f32 %v1997, 0.0
      %v2216 = vmax.f32 %v1999, 0.0
      %v2217 = vmax.f32 %v2151, 0.0
      %v2218 = vmax.f32 %v2003, 0.0
      %v2219 = vmax.f32 %v2005, 0.0
      %v2220 = vmax.f32 %v2156, 0.0
      %v2221 = vmax.f32 %v2009, 0.0
      %v2222 = vmax.f32 %v2011, 0.0
      %v2223 = vmax.f32 %v2161, 0.0
      %v2224 = vmax.f32 %v2015, 0.0
      %v2225 = vmax.f32 %v2017, 0.0
      %v2226 = vmax.f32 %v2166, 0.0
      %v2227 = vmax.f32 %v2021, 0.0
      %v2228 = vmax.f32 %v2023, 0.0
      %v2229 = vmax.f32 %v2171, 0.0
      %v2230 = vmax.f32 %v2027, 0.0
      %v2231 = vmax.f32 %v2029, 0.0
      %v2232 = vmax.f32 %v2176, 0.0
      %v2233 = vmax.f32 %v2033, 0.0
      %v2234 = vmax.f32 %v2035, 0.0
      %v2235 = vmax.f32 %v2181, 0.0
      %v2236 = vmax.f32 %v2039, 0.0
      %v2237 = vmax.f32 %v2041, 0.0
      %v2238 = vmax.f32 %v2186, 0.0
      %v2239 = vmax.f32 %v2045, 0.0
      %v2240 = vmax.f32 %v2047, 0.0
      %v2241 = vmax.f32 %v2191, 0.0
      %v2242 = vmul.f32 %v2194, %v899
      %v2243 = vmul.f32 %v2195, %v899
      %v2244 = vmul.f32 %v2196, %v899
      %v2245 = vmul.f32 %v2197, %v904
      %v2246 = vmul.f32 %v2198, %v904
      %v2247 = vmul.f32 %v2199, %v904
      %v2248 = vmul.f32 %v2200, %v909
      %v2249 = vmul.f32 %v2201, %v909
      %v2250 = vmul.f32 %v2202, %v909
      %v2251 = vmul.f32 %v2203, %v914
      %v2252 = vmul.f32 %v2204, %v914
      %v2253 = vmul.f32 %v2205, %v914
      %v2254 = vmul.f32 %v2206, %v919
      %v2255 = vmul.f32 %v2207, %v919
      %v2256 = vmul.f32 %v2208, %v919
      %v2257 = vmul.f32 %v2209, %v924
      %v2258 = vmul.f32 %v2210, %v924
      %v2259 = vmul.f32 %v2211, %v924
      %v2260 = vmul.f32 %v2212, %v929
      %v2261 = vmul.f32 %v2213, %v929
      %v2262 = vmul.f32 %v2214, %v929
      %v2263 = vmul.f32 %v2215, %v934
      %v2264 = vmul.f32 %v2216, %v934
      %v2265 = vmul.f32 %v2217, %v934
      %v2266 = vmul.f32 %v2218, %v939
      %v2267 = vmul.f32 %v2219, %v939
      %v2268 = vmul.f32 %v2220, %v939
      %v2269 = vmul.f32 %v2221, %v944
      %v2270 = vmul.f32 %v2222, %v944
      %v2271 = vmul.f32 %v2223, %v944
      %v2272 = vmul.f32 %v2224, %v949
      %v2273 = vmul.f32 %v2225, %v949
      %v2274 = vmul.f32 %v2226, %v949
      %v2275 = vmul.f32 %v2227, %v954
      %v2276 = vmul.f32 %v2228, %v954
      %v2277 = vmul.f32 %v2229, %v954
      %v2278 = vmul.f32 %v2230, %v959
      %v2279 = vmul.f32 %v2231, %v959
      %v2280 = vmul.f32 %v2232, %v959
      %v2281 = vmul.f32 %v2233, %v964
      %v2282 = vmul.f32 %v2234, %v964
      %v2283 = vmul.f32 %v2235, %v964
      %v2284 = vmul.f32 %v2236, %v969
      %v2285 = vmul.f32 %v2237, %v969
      %v2286 = vmul.f32 %v2238, %v969
      %v2287 = vmul.f32 %v2239, %v974
      %v2288 = vmul.f32 %v2240, %v974
      %v2289 = vmul.f32 %v2241, %v974
      %v2290 = vadd.f32 %v2242, %v2245
      %v2291 = vadd.f32 %v2290, %v2248
      %v2292 = vadd.f32 %v2291, %v2251
      %v2293 = vadd.f32 %v2292, %v2254
      %v2294 = vadd.f32 %v2293, %v2257
      %v2295 = vadd.f32 %v2294, %v2260
      %v2296 = vadd.f32 %v2295, %v2263
      %v2297 = vadd.f32 %v2296, %v2266
      %v2298 = vadd.f32 %v2297, %v2269
      %v2299 = vadd.f32 %v2298, %v2272
      %v2300 = vadd.f32 %v2299, %v2275
      %v2301 = vadd.f32 %v2300, %v2278
      %v2302 = vadd.f32 %v2301, %v2281
      %v2303 = vadd.f32 %v2302, %v2284
      %v2304 = vadd.f32 %v2303, %v2287
      %v2305 = vrot.slane %v2304, 4
      %v2306 = vadd.f32 %v2304, %v2305
      %v2307 = vrot.slane %v2306, 2
      %v2308 = vadd.f32 %v2306, %v2307
      %v2309 = vrot.slane %v2308, 1
      %v2310 = vadd.f32 %v2308, %v2309
      %v2311 = vadd.f32 %v2243, %v2246
      %v2312 = vadd.f32 %v2311, %v2249
      %v2313 = vadd.f32 %v2312, %v2252
      %v2314 = vadd.f32 %v2313, %v2255
      %v2315 = vadd.f32 %v2314, %v2258
      %v2316 = vadd.f32 %v2315, %v2261
      %v2317 = vadd.f32 %v2316, %v2264
      %v2318 = vadd.f32 %v2317, %v2267
      %v2319 = vadd.f32 %v2318, %v2270
      %v2320 = vadd.f32 %v2319, %v2273
      %v2321 = vadd.f32 %v2320, %v2276
      %v2322 = vadd.f32 %v2321, %v2279
      %v2323 = vadd.f32 %v2322, %v2282
      %v2324 = vadd.f32 %v2323, %v2285
      %v2325 = vadd.f32 %v2324, %v2288
      %v2326 = vrot.slane %v2325, 4
      %v2327 = vadd.f32 %v2325, %v2326
      %v2328 = vrot.slane %v2327, 2
      %v2329 = vadd.f32 %v2327, %v2328
      %v2330 = vrot.slane %v2329, 1
      %v2331 = vadd.f32 %v2329, %v2330
      %v2332 = vsel %vm1066, %v2244, 0.0
      %v2333 = vsel %vm1066, %v2247, 0.0
      %v2334 = vadd.f32 %v2332, %v2333
      %v2335 = vsel %vm1066, %v2250, 0.0
      %v2336 = vadd.f32 %v2334, %v2335
      %v2337 = vsel %vm1066, %v2253, 0.0
      %v2338 = vadd.f32 %v2336, %v2337
      %v2339 = vsel %vm1066, %v2256, 0.0
      %v2340 = vadd.f32 %v2338, %v2339
      %v2341 = vsel %vm1066, %v2259, 0.0
      %v2342 = vadd.f32 %v2340, %v2341
      %v2343 = vsel %vm1066, %v2262, 0.0
      %v2344 = vadd.f32 %v2342, %v2343
      %v2345 = vsel %vm1066, %v2265, 0.0
      %v2346 = vadd.f32 %v2344, %v2345
      %v2347 = vsel %vm1066, %v2268, 0.0
      %v2348 = vadd.f32 %v2346, %v2347
      %v2349 = vsel %vm1066, %v2271, 0.0
      %v2350 = vadd.f32 %v2348, %v2349
      %v2351 = vsel %vm1066, %v2274, 0.0
      %v2352 = vadd.f32 %v2350, %v2351
      %v2353 = vsel %vm1066, %v2277, 0.0
      %v2354 = vadd.f32 %v2352, %v2353
      %v2355 = vsel %vm1066, %v2280, 0.0
      %v2356 = vadd.f32 %v2354, %v2355
      %v2357 = vsel %vm1066, %v2283, 0.0
      %v2358 = vadd.f32 %v2356, %v2357
      %v2359 = vsel %vm1066, %v2286, 0.0
      %v2360 = vadd.f32 %v2358, %v2359
      %v2361 = vsel %vm1066, %v2289, 0.0
      %v2362 = vadd.f32 %v2360, %v2361
      %v2363 = vrot.slane %v2362, 4
      %v2364 = vadd.f32 %v2362, %v2363
      %v2365 = vrot.slane %v2364, 2
      %v2366 = vadd.f32 %v2364, %v2365
      %v2367 = vrot.slane %v2366, 1
      %v2368 = vadd.f32 %v2366, %v2367
      %v2369 = vadd.f32 %v2310, %v1112
      %v2370 = vadd.f32 %v2331, %v1112
      %v2371 = vadd.f32 %v2368, %v1112
      %v2372 = vxor.u32 %v2369, 2147483648
      %v2373 = vxor.u32 %v2370, 2147483648
      %v2374 = vxor.u32 %v2371, 2147483648
      %v2375 = vmul.f32 %v2372, 1.442695
      %v2376 = vpow.pop %v2375
      %v2377 = vmul.f32 %v2373, 1.442695
      %v2378 = vpow.pop %v2377
      %v2379 = vmul.f32 %v2374, 1.442695
      %v2380 = vpow.pop %v2379
      %v2381 = vadd.f32 %v2376, 1.0
      %v2382 = vadd.f32 %v2378, 1.0
      %v2383 = vadd.f32 %v2380, 1.0
      %v2384 = vrcp.pop %v2381
      %v2385 = vmul.f32 1.0, %v2384
      %v2386 = vrcp.pop %v2382
      %v2387 = vmul.f32 1.0, %v2386
      %v2388 = vrcp.pop %v2383
      %v2389 = vmul.f32 1.0, %v2388
      %v2393 = vcombine.low %v2385, %v2387
      %v2395 = vunpack.c.l.s4 1966171168
      %v2396 = vunpack.c.0.s8 %v2395
      %v2397 = vlaneseq
      %v2398 = vshrl.u32 %v2397, 7
      %v2399 = vsub.s32 %v2396, %v2398
      %v2400 = vrot.slane %v2393, %v2399
      %v2402 = vunpack.c.l.s4 1966171168
      %v2403 = vunpack.c.0.s8 %v2402
      %v2404 = vlaneseq
      %v2405 = vshrl.u32 %v2404, 7
      %v2406 = vsub.s32 %v2403, %v2405
      %v2407 = vrot.slane %v2389, %v2406
      %v2408 = vcombine.low %v2400, %v2407
      %v2410 = vunpack.c.l.s4 1966171168
      %v2411 = vunpack.c.0.s8 %v2410
      %v2412 = vlaneseq
      %v2413 = vshrl.u32 %v2412, 7
      %v2414 = vsub.s32 %v2411, %v2413
      %v2415 = vrot.slane %v2408, %v2414
      %2417 = vst.msk [vmem:[%s248] sm:$0x7] %vm306, %v2415
      %p2418 = scmp.lt.s32.totalorder %s19, 1
      %s2419 = scalar_select %p2418, %s19, 1
      %s2420 = smul.addr %s2419, 3
      %s2421 = scalar_lea.vmem %s6, %s2420
      // Predicated region
      $region45: #{skeleton_net2d_forward.1} parent=43 // pred_check
        %p2422 = pneg %p168
      $region46: #{skeleton_net2d_forward.1} parent=43 // pred_check_branch
        %2424 = sbr.rel (%p2422) target = $region48
      $region47: #{skeleton_net2d_forward.1} parent=43 // pred_region
        _
      $region48: #{skeleton_net2d_forward.1} parent=43 // pred_fallthru
        _
    $region44: #{skeleton_net2d_forward.1} parent=5 // pred_fallthru
      _
    %p2425 = scmp.le.s32.totalorder 2, %s14
    // Predicated region
    $region49: #{skeleton_net2d_forward.1} parent=5 // pred_check
      %p2426 = pneg %p2425
    $region50: #{skeleton_net2d_forward.1} parent=5 // pred_check_branch
      %2428 = sbr.rel (%p2426) target = $region52
    $region51: #{skeleton_net2d_forward.1} parent=5 // pred_region
      %s2429 = ssub.s32 %s14, 2
      // Predicated region
      $region53: #{skeleton_net2d_forward.1} parent=51 // pred_check
        %p2430 = pneg %p174
      $region54: #{skeleton_net2d_forward.1} parent=51 // pred_check_branch
        %2432 = sbr.rel (%p2430) target = $region56
      $region55: #{skeleton_net2d_forward.1} parent=51 // pred_region
        %p2433 = scmp.lt.s32.totalorder %s20, 1
        %s2434 = scalar_select %p2433, %s20, 1
        %s2435 = smul.addr %s2434, 3
        %s2436 = scalar_lea.vmem %s6, %s2435
      $region56: #{skeleton_net2d_forward.1} parent=51 // pred_fallthru
        _
    $region52: #{skeleton_net2d_forward.1} parent=5 // pred_fallthru
      _
  $region6: #{skeleton_net2d_forward.1} parent=0 // loop_footer
    %s18 = sadd.s32 1, %s14
  $region7: #{skeleton_net2d_forward.1} parent=0 // loop_footer_branch
    %13 = sbr.rel target = $region3
  $region8: #{skeleton_net2d_forward.1} parent=0 // loop_exit
    _

</llo_original>
